<compile_context>
chip_gen: v6e
topology: v6e:2x2x1
jax: 0.10.0
libtpu: 0.0.40
codegen_flags: <defaults>
</compile_context>

<pallas_src>
import jax
import jax.numpy as jnp
from jax.experimental import pallas as pl
from jax.experimental.pallas import tpu as pltpu

B = 2              # batch
L = 798            # sequence length required by fc1 (8 * 798 features)
LP = 896           # lane-aligned padded length (7 * 128); extra fc1 rows are zero
C_OUT = 8          # conv output channels
H = 128            # fc1 hidden
NCLS = 4           # classes
CH_PER_STEP = 2    # conv channels processed per grid step
N_STEPS = C_OUT // CH_PER_STEP
KBLK = CH_PER_STEP * LP          # fc1-weight rows streamed per grid step


def classifier_kernel(xs_ref, wconv_ref, bconv_ref, alpha_ref,
                      w1_ref, b1_ref, w2_ref, b2_ref, out_ref, acc_ref):
    # xs_ref   : (3, B, LP)   f32, VMEM  pre-shifted input rows (x[l-1], x[l], x[l+1])
    # wconv_ref: (8, 3)       f32, SMEM  conv1 weight (in_channels=1 squeezed)
    # bconv_ref: (8,)         f32, SMEM  conv1 bias
    # alpha_ref: (1,)         f32, SMEM  shared PReLU parameter
    # w1_ref   : (KBLK, H)    bf16, VMEM per-step fc1 weight chunk (channel-major)
    # b1_ref   : (1, H)       f32, VMEM
    # w2_ref   : (H, NCLS)    f32, VMEM  fc2 weight, transposed
    # b2_ref   : (1, NCLS)    f32, VMEM
    # out_ref  : (B, NCLS)    f32, VMEM  softmax probabilities
    # acc_ref  : (B, H)       f32, VMEM  running fc1 accumulator (scratch)
    g = pl.program_id(0)
    alpha = alpha_ref[0]

    @pl.when(g == 0)
    def _():
        acc_ref[...] = jnp.zeros_like(acc_ref)

    xm = xs_ref[0]          # x[l-1]
    xc = xs_ref[1]          # x[l]
    xp = xs_ref[2]          # x[l+1]

    # Conv1 (k=3, pad=1) + PReLU for the CH_PER_STEP channels of this step,
    # packed into one lane-aligned slab so a single MXU dot covers them.
    ys = []
    for j in range(CH_PER_STEP):
        c = g * CH_PER_STEP + j
        y = (wconv_ref[c, 0] * xm
             + wconv_ref[c, 1] * xc
             + wconv_ref[c, 2] * xp
             + bconv_ref[c])                          # (B, LP)
        ys.append(jnp.where(y > 0, y, alpha * y))     # PReLU
    y_slab = jnp.concatenate(ys, axis=1).astype(jnp.bfloat16)   # (B, KBLK)

    # Partial fc1: bf16 x bf16 MXU with f32 accumulation.  Zero-padded weight
    # rows neutralize the garbage conv tail in lanes [L, LP).
    acc_ref[...] += jnp.dot(y_slab, w1_ref[...],
                            preferred_element_type=jnp.float32)

    @pl.when(g == pl.num_programs(0) - 1)
    def _():
        h = acc_ref[...] + b1_ref[...]
        h = jnp.where(h > 0, h, alpha * h)            # PReLU (shared alpha)
        logits = jnp.dot(h, w2_ref[...],
                         preferred_element_type=jnp.float32) + b2_ref[...]
        # Softmax over dim=1 (classes).
        m = jnp.max(logits, axis=1, keepdims=True)
        e = jnp.exp(logits - m)
        out_ref[...] = e / jnp.sum(e, axis=1, keepdims=True)


def init_params(key):
    ks = jax.random.split(key, 6)
    scale = 0.05
    return {
        "conv_w": scale * jax.random.normal(ks[0], (C_OUT, 1, 3), jnp.float32),
        "conv_b": scale * jax.random.normal(ks[1], (C_OUT,), jnp.float32),
        "alpha": jnp.float32(0.25),                   # nn.PReLU() default init
        "fc1_w": scale * jax.random.normal(ks[2], (H, C_OUT * L), jnp.float32),
        "fc1_b": scale * jax.random.normal(ks[3], (H,), jnp.float32),
        "fc2_w": scale * jax.random.normal(ks[4], (NCLS, H), jnp.float32),
        "fc2_b": scale * jax.random.normal(ks[5], (NCLS,), jnp.float32),
    }


def classifier_forward(x, params):
    """x: (B, 1, L) float32 -> (B, 4) softmax probabilities."""
    b = x.shape[0]

    # Squeeze channel dim, zero-pad (1 left for conv "same", right up to LP+1),
    # and precompute the three shifted conv views in the XLA wrapper so the
    # kernel never does lane-misaligned slicing.
    x2 = x[:, 0, :]                                                 # (B, L)
    x_pad = jnp.zeros((b, LP + 2), jnp.float32).at[:, 1:1 + L].set(x2)
    xs = jnp.stack([x_pad[:, 0:LP],
                    x_pad[:, 1:LP + 1],
                    x_pad[:, 2:LP + 2]], axis=0)                    # (3, B, LP)

    wconv = params["conv_w"][:, 0, :]                               # (8, 3)
    bconv = params["conv_b"]                                        # (8,)
    alpha = jnp.reshape(params["alpha"], (1,))                      # (1,)

    # fc1 weight: (H, 8*L) -> (8*L, H) -> (8, L, H) -> pad L->LP -> (8*LP, H),
    # cast to bf16 (halves the dominant HBM->VMEM transfer).
    w1t = params["fc1_w"].T.reshape(C_OUT, L, H)
    w1t = jnp.pad(w1t, ((0, 0), (0, LP - L), (0, 0)))
    w1t = w1t.reshape(C_OUT * LP, H).astype(jnp.bfloat16)           # (7168, 128) bf16
    b1 = params["fc1_b"].reshape(1, H)
    w2t = params["fc2_w"].T                                         # (H, NCLS)
    b2 = params["fc2_b"].reshape(1, NCLS)

    smem = pl.BlockSpec(memory_space=pltpu.MemorySpace.SMEM)

    grid_spec = pltpu.PrefetchScalarGridSpec(
        num_scalar_prefetch=0,
        grid=(N_STEPS,),
        in_specs=[
            pl.BlockSpec((3, b, LP), lambda g: (0, 0, 0)),      # xs (resident)
            smem,                                               # conv weight
            smem,                                               # conv bias
            smem,                                               # alpha
            pl.BlockSpec((KBLK, H), lambda g: (g, 0)),          # fc1 weight chunk
            pl.BlockSpec((1, H), lambda g: (0, 0)),             # fc1 bias
            pl.BlockSpec((H, NCLS), lambda g: (0, 0)),          # fc2 weight
            pl.BlockSpec((1, NCLS), lambda g: (0, 0)),          # fc2 bias
        ],
        out_specs=pl.BlockSpec((b, NCLS), lambda g: (0, 0)),
        scratch_shapes=[pltpu.VMEM((b, H), jnp.float32)],
    )

    return pl.pallas_call(
        classifier_kernel,
        out_shape=jax.ShapeDtypeStruct((b, NCLS), jnp.float32),
        grid_spec=grid_spec,
        compiler_params=pltpu.CompilerParams(
            dimension_semantics=("arbitrary",)),                # K-reduction axis
    )(xs, wconv, bconv, alpha, w1t, b1, w2t, b2)


def reference_forward(x, params):
    """Pure-JAX f32 reference matching the PyTorch module."""
    b = x.shape[0]
    xpad = jnp.pad(x[:, 0, :], ((0, 0), (1, 1)))                    # (B, L+2)
    w = params["conv_w"]                                            # (8, 1, 3)
    y = (w[None, :, 0, 0, None] * xpad[:, None, 0:L]
         + w[None, :, 0, 1, None] * xpad[:, None, 1:L + 1]
         + w[None, :, 0, 2, None] * xpad[:, None, 2:L + 2]
         + params["conv_b"][None, :, None])                         # (B, 8, L)
    a = params["alpha"]
    y = jnp.where(y > 0, y, a * y)
    yf = y.reshape(b, -1)                                           # channel-major flatten
    h = yf @ params["fc1_w"].T + params["fc1_b"]
    h = jnp.where(h > 0, h, a * h)
    logits = h @ params["fc2_w"].T + params["fc2_b"]
    return jax.nn.softmax(logits, axis=1)


if __name__ == "__main__":
    key = jax.random.PRNGKey(0)
    pkey, xkey = jax.random.split(key)
    params = init_params(pkey)
    x = jax.random.normal(xkey, (B, 1, L), jnp.float32)

    out = classifier_forward(x, params)
    out = jax.block_until_ready(out)

    ref = jax.block_until_ready(reference_forward(x, params))
    assert out.shape == (B, NCLS)
    # Tolerance loosened for the bf16 fc1 weight (accumulation stays f32).
    assert jnp.allclose(out, ref, rtol=2e-2, atol=2e-3), (out, ref)
    assert jnp.allclose(jnp.sum(out, axis=1), 1.0, atol=1e-5)

    print("KERNEL_OK")
</pallas_src>

<mosaic_0001>
module attributes {stable_mosaic.version = 11 : i64} {
  func.func @classifier_kernel(%arg0: i32, %arg1: memref<3x2x896xf32, #tpu.memory_space<vmem>>, %arg2: memref<8x3xf32, #tpu.memory_space<smem>>, %arg3: memref<8xf32, #tpu.memory_space<smem>>, %arg4: memref<1xf32, #tpu.memory_space<smem>>, %arg5: memref<1792x128xbf16, #tpu.memory_space<vmem>>, %arg6: memref<1x128xf32, #tpu.memory_space<vmem>>, %arg7: memref<128x4xf32, #tpu.memory_space<vmem>>, %arg8: memref<1x4xf32, #tpu.memory_space<vmem>>, %arg9: memref<2x4xf32, #tpu.memory_space<vmem>>, %arg10: memref<2x128xf32, #tpu.memory_space<vmem>>) attributes {dimension_semantics = [#tpu.dimension_semantics<arbitrary>], iteration_bounds = array<i64: 4>, scalar_prefetch = 0 : i64, scratch_operands = 1 : i64, tpu.core_type = #tpu.core_type<tc>, window_params = [{pipeline_mode = #tpu.pipeline_mode<synchronous>, transform_indices = @transform_0, window_bounds = array<i64: 3, 2, 896>}, {transform_indices = @transform_1, window_bounds = array<i64: 8, 3>}, {transform_indices = @transform_2, window_bounds = array<i64: 8>}, {transform_indices = @transform_3, window_bounds = array<i64: 1>}, {transform_indices = @transform_4, window_bounds = array<i64: 1792, 128>}, {pipeline_mode = #tpu.pipeline_mode<synchronous>, transform_indices = @transform_5, window_bounds = array<i64: 1, 128>}, {pipeline_mode = #tpu.pipeline_mode<synchronous>, transform_indices = @transform_6, window_bounds = array<i64: 128, 4>}, {pipeline_mode = #tpu.pipeline_mode<synchronous>, transform_indices = @transform_7, window_bounds = array<i64: 1, 4>}, {pipeline_mode = #tpu.pipeline_mode<synchronous>, transform_indices = @transform_8, window_bounds = array<i64: 2, 4>}]} {
    %c0 = arith.constant 0 : index
    %0 = memref.load %arg4[%c0] : memref<1xf32, #tpu.memory_space<smem>>
    %c0_i32 = arith.constant 0 : i32
    %1 = arith.cmpi eq, %arg0, %c0_i32 : i32
    %2 = arith.extui %1 : i1 to i32
    %c0_i32_0 = arith.constant 0 : i32
    %3 = arith.cmpi ne, %2, %c0_i32_0 : i32
    scf.if %3 {
      %cst_25 = arith.constant 0.000000e+00 : f32
      %70 = vector.broadcast %cst_25 : f32 to vector<2x128xf32>
      %c0_26 = arith.constant 0 : index
      %c0_27 = arith.constant 0 : index
      %71 = vector.load %arg10[%c0_26, %c0_27] : memref<2x128xf32, #tpu.memory_space<vmem>>, vector<2x128xf32>
      tpu.vector_store %arg10[%c0_26, %c0_27], %70 {strides = array<i32>} : memref<2x128xf32, #tpu.memory_space<vmem>>, vector<2x128xf32>,
    } else {
    }
    %c0_1 = arith.constant 0 : index
    %c0_2 = arith.constant 0 : index
    %c0_3 = arith.constant 0 : index
    %4 = vector.load %arg1[%c0_1, %c0_2, %c0_3] : memref<3x2x896xf32, #tpu.memory_space<vmem>>, vector<1x2x896xf32>
    %5 = vector.shape_cast %4 : vector<1x2x896xf32> to vector<2x896xf32>
    %c1 = arith.constant 1 : index
    %c0_4 = arith.constant 0 : index
    %c0_5 = arith.constant 0 : index
    %6 = vector.load %arg1[%c1, %c0_4, %c0_5] : memref<3x2x896xf32, #tpu.memory_space<vmem>>, vector<1x2x896xf32>
    %7 = vector.shape_cast %6 : vector<1x2x896xf32> to vector<2x896xf32>
    %c2 = arith.constant 2 : index
    %c0_6 = arith.constant 0 : index
    %c0_7 = arith.constant 0 : index
    %8 = vector.load %arg1[%c2, %c0_6, %c0_7] : memref<3x2x896xf32, #tpu.memory_space<vmem>>, vector<1x2x896xf32>
    %9 = vector.shape_cast %8 : vector<1x2x896xf32> to vector<2x896xf32>
    %c2_i32 = arith.constant 2 : i32
    %10 = arith.muli %arg0, %c2_i32 : i32
    %c0_i32_8 = arith.constant 0 : i32
    %11 = arith.addi %10, %c0_i32_8 : i32
    %12 = arith.index_cast %11 : i32 to index
    %c0_9 = arith.constant 0 : index
    %13 = memref.load %arg2[%12, %c0_9] : memref<8x3xf32, #tpu.memory_space<smem>>
    %14 = vector.broadcast %13 : f32 to vector<2x896xf32>
    %15 = arith.mulf %14, %5 : vector<2x896xf32>
    %16 = arith.index_cast %11 : i32 to index
    %c1_10 = arith.constant 1 : index
    %17 = memref.load %arg2[%16, %c1_10] : memref<8x3xf32, #tpu.memory_space<smem>>
    %18 = vector.broadcast %17 : f32 to vector<2x896xf32>
    %19 = arith.mulf %18, %7 : vector<2x896xf32>
    %20 = arith.addf %15, %19 : vector<2x896xf32>
    %21 = arith.index_cast %11 : i32 to index
    %c2_11 = arith.constant 2 : index
    %22 = memref.load %arg2[%21, %c2_11] : memref<8x3xf32, #tpu.memory_space<smem>>
    %23 = vector.broadcast %22 : f32 to vector<2x896xf32>
    %24 = arith.mulf %23, %9 : vector<2x896xf32>
    %25 = arith.addf %20, %24 : vector<2x896xf32>
    %26 = arith.index_cast %11 : i32 to index
    %27 = memref.load %arg3[%26] : memref<8xf32, #tpu.memory_space<smem>>
    %28 = vector.broadcast %27 : f32 to vector<2x896xf32>
    %29 = arith.addf %25, %28 : vector<2x896xf32>
    %cst = arith.constant 0.000000e+00 : f32
    %30 = vector.broadcast %cst : f32 to vector<2x896xf32>
    %31 = arith.cmpf ogt, %29, %30 : vector<2x896xf32>
    %32 = vector.broadcast %0 : f32 to vector<2x896xf32>
    %33 = arith.mulf %32, %29 : vector<2x896xf32>
    %34 = arith.select %31, %29, %33 : vector<2x896xi1>, vector<2x896xf32>
    %c2_i32_12 = arith.constant 2 : i32
    %35 = arith.muli %arg0, %c2_i32_12 : i32
    %c1_i32 = arith.constant 1 : i32
    %36 = arith.addi %35, %c1_i32 : i32
    %37 = arith.index_cast %36 : i32 to index
    %c0_13 = arith.constant 0 : index
    %38 = memref.load %arg2[%37, %c0_13] : memref<8x3xf32, #tpu.memory_space<smem>>
    %39 = vector.broadcast %38 : f32 to vector<2x896xf32>
    %40 = arith.mulf %39, %5 : vector<2x896xf32>
    %41 = arith.index_cast %36 : i32 to index
    %c1_14 = arith.constant 1 : index
    %42 = memref.load %arg2[%41, %c1_14] : memref<8x3xf32, #tpu.memory_space<smem>>
    %43 = vector.broadcast %42 : f32 to vector<2x896xf32>
    %44 = arith.mulf %43, %7 : vector<2x896xf32>
    %45 = arith.addf %40, %44 : vector<2x896xf32>
    %46 = arith.index_cast %36 : i32 to index
    %c2_15 = arith.constant 2 : index
    %47 = memref.load %arg2[%46, %c2_15] : memref<8x3xf32, #tpu.memory_space<smem>>
    %48 = vector.broadcast %47 : f32 to vector<2x896xf32>
    %49 = arith.mulf %48, %9 : vector<2x896xf32>
    %50 = arith.addf %45, %49 : vector<2x896xf32>
    %51 = arith.index_cast %36 : i32 to index
    %52 = memref.load %arg3[%51] : memref<8xf32, #tpu.memory_space<smem>>
    %53 = vector.broadcast %52 : f32 to vector<2x896xf32>
    %54 = arith.addf %50, %53 : vector<2x896xf32>
    %cst_16 = arith.constant 0.000000e+00 : f32
    %55 = vector.broadcast %cst_16 : f32 to vector<2x896xf32>
    %56 = arith.cmpf ogt, %54, %55 : vector<2x896xf32>
    %57 = vector.broadcast %0 : f32 to vector<2x896xf32>
    %58 = arith.mulf %57, %54 : vector<2x896xf32>
    %59 = arith.select %56, %54, %58 : vector<2x896xi1>, vector<2x896xf32>
    %60 = tpu.concatenate %34, %59 in 1 : vector<2x896xf32>, vector<2x896xf32> -> vector<2x1792xf32>
    %61 = arith.truncf %60 : vector<2x1792xf32> to vector<2x1792xbf16>
    %c0_17 = arith.constant 0 : index
    %c0_18 = arith.constant 0 : index
    %62 = vector.load %arg10[%c0_17, %c0_18] : memref<2x128xf32, #tpu.memory_space<vmem>>, vector<2x128xf32>
    %c0_19 = arith.constant 0 : index
    %c0_20 = arith.constant 0 : index
    %63 = vector.load %arg5[%c0_19, %c0_20] : memref<1792x128xbf16, #tpu.memory_space<vmem>>, vector<1792x128xbf16>
    %cst_21 = arith.constant dense<0.000000e+00> : vector<2x128xf32>
    %64 = tpu.matmul %61, %63, %cst_21 {dimension_numbers = #tpu.dot_dimension_numbers<[1], [0], [0], [1], [0, 0, 1, 1], [], []>} : vector<2x1792xbf16>, vector<1792x128xbf16>, vector<2x128xf32> -> vector<2x128xf32>
    %65 = arith.addf %62, %64 : vector<2x128xf32>
    %c0_22 = arith.constant 0 : index
    %c0_23 = arith.constant 0 : index
    %66 = vector.load %arg10[%c0_22, %c0_23] : memref<2x128xf32, #tpu.memory_space<vmem>>, vector<2x128xf32>
    tpu.vector_store %arg10[%c0_22, %c0_23], %65 {strides = array<i32>} : memref<2x128xf32, #tpu.memory_space<vmem>>, vector<2x128xf32>,
    %c3_i32 = arith.constant 3 : i32
    %67 = arith.cmpi eq, %arg0, %c3_i32 : i32
    %68 = arith.extui %67 : i1 to i32
    %c0_i32_24 = arith.constant 0 : i32
    %69 = arith.cmpi ne, %68, %c0_i32_24 : i32
    scf.if %69 {
      %c0_25 = arith.constant 0 : index
      %c0_26 = arith.constant 0 : index
      %70 = vector.load %arg10[%c0_25, %c0_26] : memref<2x128xf32, #tpu.memory_space<vmem>>, vector<2x128xf32>
      %c0_27 = arith.constant 0 : index
      %c0_28 = arith.constant 0 : index
      %71 = vector.load %arg6[%c0_27, %c0_28] : memref<1x128xf32, #tpu.memory_space<vmem>>, vector<1x128xf32>
      %72 = vector.broadcast %71 : vector<1x128xf32> to vector<2x128xf32>
      %73 = arith.addf %70, %72 : vector<2x128xf32>
      %cst_29 = arith.constant 0.000000e+00 : f32
      %74 = vector.broadcast %cst_29 : f32 to vector<2x128xf32>
      %75 = arith.cmpf ogt, %73, %74 : vector<2x128xf32>
      %76 = vector.broadcast %0 : f32 to vector<2x128xf32>
      %77 = arith.mulf %76, %73 : vector<2x128xf32>
      %78 = arith.select %75, %73, %77 : vector<2x128xi1>, vector<2x128xf32>
      %c0_30 = arith.constant 0 : index
      %c0_31 = arith.constant 0 : index
      %79 = vector.load %arg7[%c0_30, %c0_31] : memref<128x4xf32, #tpu.memory_space<vmem>>, vector<128x4xf32>
      %cst_32 = arith.constant dense<0.000000e+00> : vector<2x4xf32>
      %80 = tpu.matmul %78, %79, %cst_32 {dimension_numbers = #tpu.dot_dimension_numbers<[1], [0], [0], [1], [0, 0, 1, 1], [], []>} : vector<2x128xf32>, vector<128x4xf32>, vector<2x4xf32> -> vector<2x4xf32>
      %c0_33 = arith.constant 0 : index
      %c0_34 = arith.constant 0 : index
      %81 = vector.load %arg8[%c0_33, %c0_34] : memref<1x4xf32, #tpu.memory_space<vmem>>, vector<1x4xf32>
      %82 = vector.broadcast %81 : vector<1x4xf32> to vector<2x4xf32>
      %83 = arith.addf %80, %82 : vector<2x4xf32>
      %cst_35 = arith.constant dense<0xFF800000> : vector<2xf32>
      %84 = vector.multi_reduction <maximumf>, %83, %cst_35 [1] : vector<2x4xf32> to vector<2xf32>
      %85 = vector.shape_cast %84 : vector<2xf32> to vector<2x1xf32>
      %86 = vector.broadcast %85 : vector<2x1xf32> to vector<2x4xf32>
      %87 = arith.subf %83, %86 : vector<2x4xf32>
      %88 = math.exp %87 : vector<2x4xf32>
      %cst_36 = arith.constant dense<0.000000e+00> : vector<2xf32>
      %89 = vector.multi_reduction <add>, %88, %cst_36 [1] : vector<2x4xf32> to vector<2xf32>
      %90 = vector.shape_cast %89 : vector<2xf32> to vector<2x1xf32>
      %91 = vector.broadcast %90 : vector<2x1xf32> to vector<2x4xf32>
      %92 = arith.divf %88, %91 : vector<2x4xf32>
      %c0_37 = arith.constant 0 : index
      %c0_38 = arith.constant 0 : index
      %93 = vector.load %arg9[%c0_37, %c0_38] : memref<2x4xf32, #tpu.memory_space<vmem>>, vector<2x4xf32>
      tpu.vector_store %arg9[%c0_37, %c0_38], %92 {strides = array<i32>} : memref<2x4xf32, #tpu.memory_space<vmem>>, vector<2x4xf32>,
    } else {
    }
    return
  }
  func.func @transform_0(%arg0: i32) -> (i32, i32, i32) {
    %c0_i32 = arith.constant 0 : i32
    %c0_i32_0 = arith.constant 0 : i32
    %c0_i32_1 = arith.constant 0 : i32
    %c0_i32_2 = arith.constant 0 : i32
    return %c0_i32, %c0_i32_0, %c0_i32_1 : i32, i32, i32
  }
  func.func @transform_1(%arg0: i32) -> (i32, i32) {
    %c0_i32 = arith.constant 0 : i32
    %c0_i32_0 = arith.constant 0 : i32
    %c0_i32_1 = arith.constant 0 : i32
    return %c0_i32, %c0_i32_0 : i32, i32
  }
  func.func @transform_2(%arg0: i32) -> i32 {
    %c0_i32 = arith.constant 0 : i32
    %c0_i32_0 = arith.constant 0 : i32
    return %c0_i32 : i32
  }
  func.func @transform_3(%arg0: i32) -> i32 {
    %c0_i32 = arith.constant 0 : i32
    %c0_i32_0 = arith.constant 0 : i32
    return %c0_i32 : i32
  }
  func.func @transform_4(%arg0: i32) -> (i32, i32) {
    %c0_i32 = arith.constant 0 : i32
    %c0_i32_0 = arith.constant 0 : i32
    return %arg0, %c0_i32 : i32, i32
  }
  func.func @transform_5(%arg0: i32) -> (i32, i32) {
    %c0_i32 = arith.constant 0 : i32
    %c0_i32_0 = arith.constant 0 : i32
    %c0_i32_1 = arith.constant 0 : i32
    return %c0_i32, %c0_i32_0 : i32, i32
  }
  func.func @transform_6(%arg0: i32) -> (i32, i32) {
    %c0_i32 = arith.constant 0 : i32
    %c0_i32_0 = arith.constant 0 : i32
    %c0_i32_1 = arith.constant 0 : i32
    return %c0_i32, %c0_i32_0 : i32, i32
  }
  func.func @transform_7(%arg0: i32) -> (i32, i32) {
    %c0_i32 = arith.constant 0 : i32
    %c0_i32_0 = arith.constant 0 : i32
    %c0_i32_1 = arith.constant 0 : i32
    return %c0_i32, %c0_i32_0 : i32, i32
  }
  func.func @transform_8(%arg0: i32) -> (i32, i32) {
    %c0_i32 = arith.constant 0 : i32
    %c0_i32_0 = arith.constant 0 : i32
    %c0_i32_1 = arith.constant 0 : i32
    return %c0_i32, %c0_i32_0 : i32, i32
  }
}

</mosaic_0001>

<llo_original>
// kernel: tpu_custom_call.1
$region0: #{tpu_custom_call.1}
  #allocation0 [shape = 'u32[]', space=smem, size = 0x4, offset = 0x4, fixed_abs, tag = 'smem constant byte address 0x4 - core index']
  #allocation1 [shape = 'u32[144,128]{1,0:T(1,128)}', space=vmem, size = 0x12000, scoped, tag = 'internal scratch']
  #allocation2 [shape = 'f32[2,128]{1,0:T(2,128)}', space=vmem, size = 0x400, scoped, tag = 'scratch operand']
  #allocation3 [shape = 'f32[1]{0:T(128)S(6)}', space=smem, size = 0x200, scoped, tag = 'scoped memory for tpu_custom_call.1']
  %s0 = inlined_call_operand.hbm [shape: f32[3,2,896], index: 0, kind: input, shape index: {}]
  %s1 = inlined_call_operand.vmem [shape: f32[8,3], index: 1, kind: input, shape index: {}]
  %s2 = inlined_call_operand.hbm [shape: f32[8], index: 2, kind: input, shape index: {}]
  %s3 = inlined_call_operand.<no memory space> [shape: f32[1], index: 3, kind: input, shape index: {}]
  %s4 = inlined_call_operand.hbm [shape: bf16[7168,128], index: 4, kind: input, shape index: {}]
  %s5 = inlined_call_operand.hbm [shape: f32[1,128], index: 5, kind: input, shape index: {}]
  %s6 = inlined_call_operand.vmem [shape: f32[128,4], index: 6, kind: input, shape index: {}]
  %s7 = inlined_call_operand.hbm [shape: f32[1,4], index: 7, kind: input, shape index: {}]
  %s8 = inlined_call_operand.hbm [shape: f32[2,4], index: 8, kind: output, shape index: {}]
  %s9 = sld [smem:[#allocation0]]
  $region97: #{tpu_custom_call.1} parent=0
    _
  %s11 = ssub.s32 1, %s9
  %s12 = scalar_select 0, %s11, %s9
  %13 = sst [smem:[#allocation3]] %s3
  $region1: #{tpu_custom_call.1} parent=0
    #allocation4 [shape = 'u8[21504]{0}', space=vmem, size = 0x5400, scoped, tag = 'input window, operand 0, single buffered']
    #allocation5 [shape = 's32[2]{0}', space=sflag, size = 0x8, scoped, tag = 'scoped memory for tpu_custom_call.1']
    #allocation6 [shape = 's32[2]{0}', space=sflag, size = 0x8, scoped, tag = 'scoped memory for tpu_custom_call.1']
    #allocation7 [shape = 's32[2]{0}', space=sflag, size = 0x8, scoped, tag = 'scoped memory for tpu_custom_call.1']
    #allocation8 [shape = 's32[2]{0}', space=sflag, size = 0x8, scoped, tag = 'scoped memory for tpu_custom_call.1']
    #allocation9 [shape = 'u8[4096]{0}', space=smem, size = 0x1000, scoped, tag = 'input window, operand 1, single buffered']
    #allocation10 [shape = 'u8[512]{0}', space=smem, size = 0x200, scoped, tag = 'input window, operand 2, single buffered']
    #allocation11 [shape = 'u8[917504]{0}', space=vmem, size = 0xe0000, scoped, tag = 'input window, operand 4']
    #allocation12 [shape = 's32[2]{0}', space=sflag, size = 0x8, scoped, tag = 'scoped memory for tpu_custom_call.1']
    #allocation13 [shape = 'u8[512]{0}', space=vmem, size = 0x400, scoped, tag = 'input window, operand 5, single buffered']
    #allocation14 [shape = 'u8[512]{0}', space=vmem, size = 0x400, scoped, tag = 'input window, operand 7, single buffered']
    #allocation15 [shape = 's32[1]{0}', space=sflag, size = 0x4, scoped, tag = 'scoped memory for tpu_custom_call.1']
    #allocation16 [shape = 'u8[1024]{0}', space=vmem, size = 0x400, scoped, tag = 'output window, operand 0, single buffered']
    %14 = vsyncpa [#allocation5], 0
    %15 = vsyncpa [#allocation8], 0
    %16 = vsyncpa [#allocation7], 0
    %17 = vsyncpa [#allocation12], 0
    %s18 = scalar_lea.sflag [#allocation12], 1
    %19 = vsyncpa %s18, 0
    %20 = vsyncpa [#allocation15], 0
    %21 = vsyncpa [#allocation6], 0
    loop: start=0, step=1, limit=6
    $region2: #{tpu_custom_call.1} parent=1 // loop_pre_header
      _
    $region3: #{tpu_custom_call.1} parent=1 // loop_header
      %s23 = sphi 0, %s27
      %p24 = scmp.ge.s32.totalorder %s23, 6
      %s31 = sphi 0, %s31
      %s33 = sphi 0, %s31
      %s34 = sphi 0, %s33
      %s48 = sphi 0, %s34
      %s52 = sphi 0, %s52
      %s54 = sphi 0, %s52
      %s55 = sphi 0, %s54
      %s69 = sphi 0, %s55
      %s73 = sphi 0, %s73
      %s75 = sphi 0, %s73
      %s76 = sphi 0, %s75
      %s90 = sphi 0, %s76
      %s94 = sphi 0, %s94
      %s96 = sphi 0, %s94
      %s97 = sphi 0, %s96
      %s111 = sphi 0, %s97
      %s117 = sphi 0, %s119
      %s120 = sphi 0, %s117
      %s121 = sphi 0, %s120
      %s137 = sphi 0, %s121
      %s141 = sphi 0, %s141
      %s143 = sphi 0, %s141
      %s144 = sphi 0, %s143
      %s158 = sphi 0, %s144
      %s162 = sphi 0, %s162
      %s164 = sphi 0, %s162
      %s165 = sphi 0, %s164
      %s179 = sphi 0, %s165
      %s183 = sphi 0, %s183
      %s185 = sphi 0, %s183
      %s186 = sphi 0, %s185
      %s200 = sphi 0, %s186
      %s204 = sphi 0, %s204
      %s206 = sphi 0, %s204
      %s207 = sphi 0, %s206
      %s221 = sphi 0, %s207
    $region4: #{tpu_custom_call.1} parent=1 // loop_header_branch
      %26 = sbr.rel (%p24) target = $region8
    $region5: #{tpu_custom_call.1} parent=1 // loop_body
      %s28 = ssub.s32 %s23, 1
      %s29 = ssub.s32 %s23, 2
      %s30 = sadd.s32 %s23, 1
      %s32 = sadd.s32 %s31, 1
      %p35 = scmp.eq.s32.totalorder %s23, 3
      %p36 = scmp.ne.s32.totalorder %s31, %s33
      %p37 = scmp.eq.s32.totalorder %s23, 0
      %p38 = por %p36, %p37
      %p39 = scmp.ne.s32.totalorder %s31, %s33
      %p40 = scmp.eq.s32.totalorder %s28, 3
      %p41 = por %p39, %p40
      %p42 = scmp.ne.s32.totalorder %s33, %s34
      %p43 = scmp.eq.s32.totalorder %s28, 0
      %p44 = por %p42, %p43
      %p45 = scmp.ne.s32.totalorder %s33, %s34
      %p46 = scmp.eq.s32.totalorder %s29, 3
      %p47 = por %p45, %p46
      %p49 = scmp.ne.s32.totalorder %s34, %s48
      %p50 = scmp.eq.s32.totalorder %s29, 0
      %p51 = por %p49, %p50
      %s53 = sadd.s32 %s52, 1
      %p56 = scmp.eq.s32.totalorder %s23, 3
      %p57 = scmp.ne.s32.totalorder %s52, %s54
      %p58 = scmp.eq.s32.totalorder %s23, 0
      %p59 = por %p57, %p58
      %p60 = scmp.ne.s32.totalorder %s52, %s54
      %p61 = scmp.eq.s32.totalorder %s28, 3
      %p62 = por %p60, %p61
      %p63 = scmp.ne.s32.totalorder %s54, %s55
      %p64 = scmp.eq.s32.totalorder %s28, 0
      %p65 = por %p63, %p64
      %p66 = scmp.ne.s32.totalorder %s54, %s55
      %p67 = scmp.eq.s32.totalorder %s29, 3
      %p68 = por %p66, %p67
      %p70 = scmp.ne.s32.totalorder %s55, %s69
      %p71 = scmp.eq.s32.totalorder %s29, 0
      %p72 = por %p70, %p71
      %s74 = sadd.s32 %s73, 1
      %p77 = scmp.eq.s32.totalorder %s23, 3
      %p78 = scmp.ne.s32.totalorder %s73, %s75
      %p79 = scmp.eq.s32.totalorder %s23, 0
      %p80 = por %p78, %p79
      %p81 = scmp.ne.s32.totalorder %s73, %s75
      %p82 = scmp.eq.s32.totalorder %s28, 3
      %p83 = por %p81, %p82
      %p84 = scmp.ne.s32.totalorder %s75, %s76
      %p85 = scmp.eq.s32.totalorder %s28, 0
      %p86 = por %p84, %p85
      %p87 = scmp.ne.s32.totalorder %s75, %s76
      %p88 = scmp.eq.s32.totalorder %s29, 3
      %p89 = por %p87, %p88
      %p91 = scmp.ne.s32.totalorder %s76, %s90
      %p92 = scmp.eq.s32.totalorder %s29, 0
      %p93 = por %p91, %p92
      %s95 = sadd.s32 %s94, 1
      %p98 = scmp.eq.s32.totalorder %s23, 3
      %p99 = scmp.ne.s32.totalorder %s94, %s96
      %p100 = scmp.eq.s32.totalorder %s23, 0
      %p101 = por %p99, %p100
      %p102 = scmp.ne.s32.totalorder %s94, %s96
      %p103 = scmp.eq.s32.totalorder %s28, 3
      %p104 = por %p102, %p103
      %p105 = scmp.ne.s32.totalorder %s96, %s97
      %p106 = scmp.eq.s32.totalorder %s28, 0
      %p107 = por %p105, %p106
      %p108 = scmp.ne.s32.totalorder %s96, %s97
      %p109 = scmp.eq.s32.totalorder %s29, 3
      %p110 = por %p108, %p109
      %p112 = scmp.ne.s32.totalorder %s97, %s111
      %p113 = scmp.eq.s32.totalorder %s29, 0
      %p114 = por %p112, %p113
      %s115 = ssub.s32 %s23, %s30
      %p116 = scmp.eq.s32.totalorder %s115, 0
      %s118 = sadd.s32 %s117, 1
      %s119 = scalar_select %p116, %s117, %s118
      %p122 = pneg %p116
      %p123 = scmp.eq.s32.totalorder %s23, 3
      %p124 = por %p122, %p123
      %p125 = scmp.ne.s32.totalorder %s117, %s120
      %p126 = scmp.eq.s32.totalorder %s23, 0
      %p127 = por %p125, %p126
      %p128 = scmp.ne.s32.totalorder %s117, %s120
      %p129 = scmp.eq.s32.totalorder %s28, 3
      %p130 = por %p128, %p129
      %p131 = scmp.ne.s32.totalorder %s120, %s121
      %p132 = scmp.eq.s32.totalorder %s28, 0
      %p133 = por %p131, %p132
      %p134 = scmp.ne.s32.totalorder %s120, %s121
      %p135 = scmp.eq.s32.totalorder %s29, 3
      %p136 = por %p134, %p135
      %p138 = scmp.ne.s32.totalorder %s121, %s137
      %p139 = scmp.eq.s32.totalorder %s29, 0
      %p140 = por %p138, %p139
      %s142 = sadd.s32 %s141, 1
      %p145 = scmp.eq.s32.totalorder %s23, 3
      %p146 = scmp.ne.s32.totalorder %s141, %s143
      %p147 = scmp.eq.s32.totalorder %s23, 0
      %p148 = por %p146, %p147
      %p149 = scmp.ne.s32.totalorder %s141, %s143
      %p150 = scmp.eq.s32.totalorder %s28, 3
      %p151 = por %p149, %p150
      %p152 = scmp.ne.s32.totalorder %s143, %s144
      %p153 = scmp.eq.s32.totalorder %s28, 0
      %p154 = por %p152, %p153
      %p155 = scmp.ne.s32.totalorder %s143, %s144
      %p156 = scmp.eq.s32.totalorder %s29, 3
      %p157 = por %p155, %p156
      %p159 = scmp.ne.s32.totalorder %s144, %s158
      %p160 = scmp.eq.s32.totalorder %s29, 0
      %p161 = por %p159, %p160
      %s163 = sadd.s32 %s162, 1
      %p166 = scmp.eq.s32.totalorder %s23, 3
      %p167 = scmp.ne.s32.totalorder %s162, %s164
      %p168 = scmp.eq.s32.totalorder %s23, 0
      %p169 = por %p167, %p168
      %p170 = scmp.ne.s32.totalorder %s162, %s164
      %p171 = scmp.eq.s32.totalorder %s28, 3
      %p172 = por %p170, %p171
      %p173 = scmp.ne.s32.totalorder %s164, %s165
      %p174 = scmp.eq.s32.totalorder %s28, 0
      %p175 = por %p173, %p174
      %p176 = scmp.ne.s32.totalorder %s164, %s165
      %p177 = scmp.eq.s32.totalorder %s29, 3
      %p178 = por %p176, %p177
      %p180 = scmp.ne.s32.totalorder %s165, %s179
      %p181 = scmp.eq.s32.totalorder %s29, 0
      %p182 = por %p180, %p181
      %s184 = sadd.s32 %s183, 1
      %p187 = scmp.eq.s32.totalorder %s23, 3
      %p188 = scmp.ne.s32.totalorder %s183, %s185
      %p189 = scmp.eq.s32.totalorder %s23, 0
      %p190 = por %p188, %p189
      %p191 = scmp.ne.s32.totalorder %s183, %s185
      %p192 = scmp.eq.s32.totalorder %s28, 3
      %p193 = por %p191, %p192
      %p194 = scmp.ne.s32.totalorder %s185, %s186
      %p195 = scmp.eq.s32.totalorder %s28, 0
      %p196 = por %p194, %p195
      %p197 = scmp.ne.s32.totalorder %s185, %s186
      %p198 = scmp.eq.s32.totalorder %s29, 3
      %p199 = por %p197, %p198
      %p201 = scmp.ne.s32.totalorder %s186, %s200
      %p202 = scmp.eq.s32.totalorder %s29, 0
      %p203 = por %p201, %p202
      %s205 = sadd.s32 %s204, 1
      %p208 = scmp.eq.s32.totalorder %s23, 3
      %p209 = scmp.ne.s32.totalorder %s204, %s206
      %p210 = scmp.eq.s32.totalorder %s23, 0
      %p211 = por %p209, %p210
      %p212 = scmp.ne.s32.totalorder %s204, %s206
      %p213 = scmp.eq.s32.totalorder %s28, 3
      %p214 = por %p212, %p213
      %p215 = scmp.ne.s32.totalorder %s206, %s207
      %p216 = scmp.eq.s32.totalorder %s28, 0
      %p217 = por %p215, %p216
      %p218 = scmp.ne.s32.totalorder %s206, %s207
      %p219 = scmp.eq.s32.totalorder %s29, 3
      %p220 = por %p218, %p219
      %p222 = scmp.ne.s32.totalorder %s207, %s221
      %p223 = scmp.eq.s32.totalorder %s29, 0
      %p224 = por %p222, %p223
      %p225 = scmp.le.s32.totalorder 1, %s23
      %p226 = scmp.lt.s32.totalorder %s23, 5
      %p227 = pnand %p225, %p226
      %p228 = pneg %p227
      // Predicated region
      $region9: #{tpu_custom_call.1} parent=5 // pred_check
        _
      $region10: #{tpu_custom_call.1} parent=5 // pred_check_branch
        %230 = sbr.rel (%p227) target = $region12
      $region11: #{tpu_custom_call.1} parent=5 // pred_region
        %s231 = ssub.s32 %s23, 1
        // Predicated region
        $region13: #{tpu_custom_call.1} parent=11 // pred_check
          %p232 = pneg %p44
        $region14: #{tpu_custom_call.1} parent=11 // pred_check_branch
          %234 = sbr.rel (%p232) target = $region16
        $region15: #{tpu_custom_call.1} parent=11 // pred_region
          %s236 = ssub.s32 672, 672
          %237 = vsyncadd [#allocation5], %s236
          %s238 = sshll.u32 [#allocation4], 4
          %s239 = int_to_ptr.vmem [resolvable:$true] %s238
          %244 = dma.hbm_to_vmem [thread:$0]  %s0, 672, %s239, [#allocation5], 224, 224, 14
        $region16: #{tpu_custom_call.1} parent=11 // pred_fallthru
          _
        // Predicated region
        $region17: #{tpu_custom_call.1} parent=11 // pred_check
          %p245 = pneg %p65
        $region18: #{tpu_custom_call.1} parent=11 // pred_check_branch
          %247 = sbr.rel (%p245) target = $region20
        $region19: #{tpu_custom_call.1} parent=11 // pred_region
          %s249 = ssub.s32 128, 128
          %250 = vsyncadd [#allocation8], %s249
          %s252 = sshll.u32 %s1, 4
          %s253 = int_to_ptr.vmem [resolvable:$true] %s252
          %255 = dma.vmem_to_smem %s253, 128, [#allocation9], [#allocation8]
        $region20: #{tpu_custom_call.1} parent=11 // pred_fallthru
          _
        // Predicated region
        $region21: #{tpu_custom_call.1} parent=11 // pred_check
          %p256 = pneg %p86
        $region22: #{tpu_custom_call.1} parent=11 // pred_check_branch
          %258 = sbr.rel (%p256) target = $region24
        $region23: #{tpu_custom_call.1} parent=11 // pred_region
          %s260 = ssub.s32 16, 16
          %261 = vsyncadd [#allocation7], %s260
          %264 = dma.hbm_to_smem %s2, 16, [#allocation10], [#allocation7]
        $region24: #{tpu_custom_call.1} parent=11 // pred_fallthru
          _
        // Predicated region
        $region25: #{tpu_custom_call.1} parent=11 // pred_check
          %p265 = pneg %p107
        $region26: #{tpu_custom_call.1} parent=11 // pred_check_branch
          %267 = sbr.rel (%p265) target = $region28
        $region27: #{tpu_custom_call.1} parent=11 // pred_region
          _
        $region28: #{tpu_custom_call.1} parent=11 // pred_fallthru
          _
        // Predicated region
        $region29: #{tpu_custom_call.1} parent=11 // pred_check
          %p268 = pneg %p154
        $region30: #{tpu_custom_call.1} parent=11 // pred_check_branch
          %270 = sbr.rel (%p268) target = $region32
        $region31: #{tpu_custom_call.1} parent=11 // pred_region
          %s272 = ssub.s32 16, 16
          %273 = vsyncadd [#allocation12], %s272
          %s275 = sshll.u32 [#allocation13], 4
          %s276 = int_to_ptr.vmem [resolvable:$true] %s275
          %278 = dma.hbm_to_vmem [thread:$0]  %s5, 16, %s276, [#allocation12]
        $region32: #{tpu_custom_call.1} parent=11 // pred_fallthru
          _
        // Predicated region
        $region33: #{tpu_custom_call.1} parent=11 // pred_check
          %p279 = pneg %p175
        $region34: #{tpu_custom_call.1} parent=11 // pred_check_branch
          %281 = sbr.rel (%p279) target = $region36
        $region35: #{tpu_custom_call.1} parent=11 // pred_region
          _
        $region36: #{tpu_custom_call.1} parent=11 // pred_fallthru
          _
        // Predicated region
        $region37: #{tpu_custom_call.1} parent=11 // pred_check
          %p282 = pneg %p196
        $region38: #{tpu_custom_call.1} parent=11 // pred_check_branch
          %284 = sbr.rel (%p282) target = $region40
        $region39: #{tpu_custom_call.1} parent=11 // pred_region
          %s286 = ssub.s32 16, 16
          %287 = vsyncadd [#allocation15], %s286
          %s289 = sshll.u32 [#allocation14], 4
          %s290 = int_to_ptr.vmem [resolvable:$true] %s289
          %292 = dma.hbm_to_vmem [thread:$0]  %s7, 16, %s290, [#allocation15]
        $region40: #{tpu_custom_call.1} parent=11 // pred_fallthru
          _
      $region12: #{tpu_custom_call.1} parent=5 // pred_fallthru
        _
      %p293 = scmp.lt.s32.totalorder %s23, 4
      // Predicated region
      $region41: #{tpu_custom_call.1} parent=5 // pred_check
        %p294 = pneg %p293
      $region42: #{tpu_custom_call.1} parent=5 // pred_check_branch
        %296 = sbr.rel (%p294) target = $region44
      $region43: #{tpu_custom_call.1} parent=5 // pred_region
        // Predicated region
        $region45: #{tpu_custom_call.1} parent=43 // pred_check
          %p297 = pneg %p127
        $region46: #{tpu_custom_call.1} parent=43 // pred_check_branch
          %299 = sbr.rel (%p297) target = $region48
        $region47: #{tpu_custom_call.1} parent=43 // pred_region
          %s300 = sand.u32 %s23, 1
          %s301 = scalar_lea.sflag [#allocation12], %s300
          %s302 = sand.u32 %s117, 1
          %s303 = smul.addr %s302, 896
          %s304 = scalar_lea.vmem [#allocation11], %s303
          %s305 = smul.u32 224, %s23
          %s307 = ssub.s32 14336, 14336
          %308 = vsyncadd %s301, %s307
          %s309 = smul.addr %s305, 64
          %s310 = scalar_lea.hbm %s4, %s309
          %s311 = sshll.u32 %s304, 4
          %s312 = int_to_ptr.vmem [resolvable:$true] %s311
          %317 = dma.hbm_to_vmem [thread:$0]  %s310, 14336, %s312, %s301, 64, 64, 4
        $region48: #{tpu_custom_call.1} parent=43 // pred_fallthru
          _
      $region44: #{tpu_custom_call.1} parent=5 // pred_fallthru
        _
      %p318 = scmp.le.s32.totalorder 1, %s23
      %p319 = scmp.lt.s32.totalorder %s23, 5
      %p320 = pnand %p318, %p319
      %p321 = pneg %p320
      // Predicated region
      $region49: #{tpu_custom_call.1} parent=5 // pred_check
        _
      $region50: #{tpu_custom_call.1} parent=5 // pred_check_branch
        %323 = sbr.rel (%p320) target = $region52
      $region51: #{tpu_custom_call.1} parent=5 // pred_region
        %s324 = ssub.s32 %s23, 1
        // Predicated region
        $region53: #{tpu_custom_call.1} parent=51 // pred_check
          %p325 = pneg %p44
        $region54: #{tpu_custom_call.1} parent=51 // pred_check_branch
          %327 = sbr.rel (%p325) target = $region56
        $region55: #{tpu_custom_call.1} parent=51 // pred_region
          %328 = dma.done [#allocation5], 672
        $region56: #{tpu_custom_call.1} parent=51 // pred_fallthru
          _
        // Predicated region
        $region57: #{tpu_custom_call.1} parent=51 // pred_check
          %p329 = pneg %p65
        $region58: #{tpu_custom_call.1} parent=51 // pred_check_branch
          %331 = sbr.rel (%p329) target = $region60
        $region59: #{tpu_custom_call.1} parent=51 // pred_region
          %332 = dma.done [#allocation8], 128
        $region60: #{tpu_custom_call.1} parent=51 // pred_fallthru
          _
        // Predicated region
        $region61: #{tpu_custom_call.1} parent=51 // pred_check
          %p333 = pneg %p86
        $region62: #{tpu_custom_call.1} parent=51 // pred_check_branch
          %335 = sbr.rel (%p333) target = $region64
        $region63: #{tpu_custom_call.1} parent=51 // pred_region
          %336 = dma.done [#allocation7], 16
        $region64: #{tpu_custom_call.1} parent=51 // pred_fallthru
          _
        %s337 = sand.u32 %s28, 1
        %s338 = scalar_lea.sflag [#allocation12], %s337
        %s339 = sand.u32 %s120, 1
        %s340 = smul.addr %s339, 896
        %s341 = scalar_lea.vmem [#allocation11], %s340
        // Predicated region
        $region65: #{tpu_custom_call.1} parent=51 // pred_check
          %p342 = pneg %p133
        $region66: #{tpu_custom_call.1} parent=51 // pred_check_branch
          %344 = sbr.rel (%p342) target = $region68
        $region67: #{tpu_custom_call.1} parent=51 // pred_region
          %345 = dma.done %s338, 14336
        $region68: #{tpu_custom_call.1} parent=51 // pred_fallthru
          _
        // Predicated region
        $region69: #{tpu_custom_call.1} parent=51 // pred_check
          %p346 = pneg %p154
        $region70: #{tpu_custom_call.1} parent=51 // pred_check_branch
          %348 = sbr.rel (%p346) target = $region72
        $region71: #{tpu_custom_call.1} parent=51 // pred_region
          %349 = dma.done [#allocation12], 16
        $region72: #{tpu_custom_call.1} parent=51 // pred_fallthru
          _
        // Predicated region
        $region73: #{tpu_custom_call.1} parent=51 // pred_check
          %p350 = pneg %p196
        $region74: #{tpu_custom_call.1} parent=51 // pred_check_branch
          %352 = sbr.rel (%p350) target = $region76
        $region75: #{tpu_custom_call.1} parent=51 // pred_region
          %353 = dma.done [#allocation15], 16
        $region76: #{tpu_custom_call.1} parent=51 // pred_fallthru
          _
        %354 = sfence
        %p355 = pneg %p44
        %p356 = pneg %p41
        %p357 = pneg %p65
        %p358 = pneg %p62
        %p359 = pneg %p86
        %p360 = pneg %p83
        %p361 = pneg %p107
        %p362 = pneg %p104
        %s363 = sand.u32 %s28, 1
        %s364 = scalar_lea.sflag [#allocation12], %s363
        %s365 = sand.u32 %s120, 1
        %s366 = smul.addr %s365, 896
        %s367 = scalar_lea.vmem [#allocation11], %s366
        %p368 = pneg %p133
        %p369 = pneg %p130
        %p370 = pneg %p154
        %p371 = pneg %p151
        %p372 = pneg %p175
        %p373 = pneg %p172
        %p374 = pneg %p196
        %p375 = pneg %p193
        %p376 = pneg %p217
        %p377 = pneg %p214
        %s378 = smul.u32 224, %s28
        %s380 = sld [smem:[#allocation3]]
        %p381 = scmp.eq.s32.totalorder %s28, 0
        // Predicated region
        $region77: #{tpu_custom_call.1} parent=51 // pred_check
          %p382 = pneg %p381
        $region78: #{tpu_custom_call.1} parent=51 // pred_check_branch
          %384 = sbr.rel (%p382) target = $region80
        $region79: #{tpu_custom_call.1} parent=51 // pred_region
          %385 = vst [vmem:[#allocation2] sm:$0x3] 0.0
        $region80: #{tpu_custom_call.1} parent=51 // pred_fallthru
          _
        %v386 = vld [vmem:[#allocation4] sm:$0xff]
        %v387 = vld [vmem:[#allocation4 + $0x8] sm:$0x3f]
        %s388 = scalar_lea.vmem [#allocation4], 14
        %v389 = vld [vmem:[%s388] sm:$0xff]
        %v390 = vld [vmem:[%s388 + $0x8] sm:$0x3f]
        %s391 = scalar_lea.vmem [#allocation4], 28
        %v392 = vld [vmem:[%s391] sm:$0xff]
        %v393 = vld [vmem:[%s391 + $0x8] sm:$0x3f]
        %s394 = smul.u32 %s28, 2
        %s395 = smul.u32 %s394, 128
        %s396 = sld [smem:[#allocation9 + %s395]]
        %v397 = vstv %s396
        %v398 = vmul.f32 %v397, %v386
        %v399 = vmul.f32 %v397, %v387
        %s400 = sadd.s32 %s395, 1
        %s401 = sld [smem:[#allocation9 + %s400]]
        %v402 = vstv %s401
        %v403 = vmul.f32 %v402, %v389
        %v404 = vmul.f32 %v402, %v390
        %v405 = vadd.f32 %v398, %v403
        %v406 = vadd.f32 %v399, %v404
        %s407 = sadd.s32 %s395, 2
        %s408 = sld [smem:[#allocation9 + %s407]]
        %v409 = vstv %s408
        %v410 = vmul.f32 %v409, %v392
        %v411 = vmul.f32 %v409, %v393
        %v412 = vadd.f32 %v405, %v410
        %v413 = vadd.f32 %v406, %v411
        %s414 = sld [smem:[#allocation10 + %s394]]
        %v415 = vstv %s414
        %v416 = vadd.f32 %v412, %v415
        %v417 = vadd.f32 %v413, %v415
        %vm418 = vcmp.gt.f32.partialorder %v416, 0.0
        %vm419 = vcmp.gt.f32.partialorder %v417, 0.0
        %v420 = vstv %s380
        %v421 = vmul.f32 %v420, %v416
        %v422 = vmul.f32 %v420, %v417
        %v423 = vsel %vm418, %v416, %v421
        %v424 = vsel %vm419, %v417, %v422
        %s425 = sadd.s32 %s394, 1
        %s426 = smul.u32 %s425, 128
        %s427 = sld [smem:[#allocation9 + %s426]]
        %v428 = vstv %s427
        %v429 = vmul.f32 %v428, %v386
        %v430 = vmul.f32 %v428, %v387
        %s431 = sadd.s32 %s426, 1
        %s432 = sld [smem:[#allocation9 + %s431]]
        %v433 = vstv %s432
        %v434 = vmul.f32 %v433, %v389
        %v435 = vmul.f32 %v433, %v390
        %v436 = vadd.f32 %v429, %v434
        %v437 = vadd.f32 %v430, %v435
        %s438 = sadd.s32 %s426, 2
        %s439 = sld [smem:[#allocation9 + %s438]]
        %v440 = vstv %s439
        %v441 = vmul.f32 %v440, %v392
        %v442 = vmul.f32 %v440, %v393
        %v443 = vadd.f32 %v436, %v441
        %v444 = vadd.f32 %v437, %v442
        %s445 = sld [smem:[#allocation10 + %s425]]
        %v446 = vstv %s445
        %v447 = vadd.f32 %v443, %v446
        %v448 = vadd.f32 %v444, %v446
        %vm449 = vcmp.gt.f32.partialorder %v447, 0.0
        %vm450 = vcmp.gt.f32.partialorder %v448, 0.0
        %v451 = vmul.f32 %v420, %v447
        %v452 = vmul.f32 %v420, %v448
        %v453 = vsel %vm449, %v447, %v451
        %v454 = vsel %vm450, %v448, %v452
        %v457 = vcombine.high %v423, %v423
        %v459 = vunpack.c.l.s4 1983009808
        %v460 = vunpack.c.0.s8 %v459
        %v461 = vlaneseq
        %v462 = vshrl.u32 %v461, 7
        %v463 = vsub.s32 %v460, %v462
        %v464 = vrot.slane %v423, %v463
        %v466 = vunpack.c.l.s4 1983009808
        %v467 = vunpack.c.0.s8 %v466
        %v468 = vlaneseq
        %v469 = vshrl.u32 %v468, 7
        %v470 = vsub.s32 %v467, %v469
        %v471 = vrot.slane %v457, %v470
        %v472 = vcombine.high %v464, %v464
        %v473 = vcombine.high %v471, %v471
        %v474 = vcombine.high %v424, %v424
        %v476 = vunpack.c.l.s4 1983009808
        %v477 = vunpack.c.0.s8 %v476
        %v478 = vlaneseq
        %v479 = vshrl.u32 %v478, 7
        %v480 = vsub.s32 %v477, %v479
        %v481 = vrot.slane %v424, %v480
        %v483 = vunpack.c.l.s4 1983009808
        %v484 = vunpack.c.0.s8 %v483
        %v485 = vlaneseq
        %v486 = vshrl.u32 %v485, 7
        %v487 = vsub.s32 %v484, %v486
        %v488 = vrot.slane %v474, %v487
        %v489 = vcombine.high %v481, %v481
        %v499 = vcombine.high %v453, %v453
        %v501 = vunpack.c.l.s4 1983009808
        %v502 = vunpack.c.0.s8 %v501
        %v503 = vlaneseq
        %v504 = vshrl.u32 %v503, 7
        %v505 = vsub.s32 %v502, %v504
        %v506 = vrot.slane %v453, %v505
        %v508 = vunpack.c.l.s4 1983009808
        %v509 = vunpack.c.0.s8 %v508
        %v510 = vlaneseq
        %v511 = vshrl.u32 %v510, 7
        %v512 = vsub.s32 %v509, %v511
        %v513 = vrot.slane %v499, %v512
        %v514 = vcombine.high %v506, %v506
        %v515 = vcombine.high %v513, %v513
        %v516 = vcombine.high %v454, %v454
        %v518 = vunpack.c.l.s4 1983009808
        %v519 = vunpack.c.0.s8 %v518
        %v520 = vlaneseq
        %v521 = vshrl.u32 %v520, 7
        %v522 = vsub.s32 %v519, %v521
        %v523 = vrot.slane %v454, %v522
        %v525 = vunpack.c.l.s4 1983009808
        %v526 = vunpack.c.0.s8 %v525
        %v527 = vlaneseq
        %v528 = vshrl.u32 %v527, 7
        %v529 = vsub.s32 %v526, %v528
        %v530 = vrot.slane %v516, %v529
        %v531 = vcombine.high %v523, %v523
        %v539 = vpack.c.bf16 %v464, %v464
        %v540 = vpack.c.bf16 %v472, %v472
        %v541 = vpack.c.bf16 %v471, %v471
        %v542 = vpack.c.bf16 %v473, %v473
        %v543 = vpack.c.bf16 %v481, %v481
        %v544 = vpack.c.bf16 %v489, %v489
        %v545 = vpack.c.bf16 %v488, %v488
        %v546 = vpack.c.bf16 %v506, %v506
        %v547 = vpack.c.bf16 %v514, %v514
        %v548 = vpack.c.bf16 %v513, %v513
        %v549 = vpack.c.bf16 %v515, %v515
        %v550 = vpack.c.bf16 %v523, %v523
        %v551 = vpack.c.bf16 %v531, %v531
        %v552 = vpack.c.bf16 %v530, %v530
        %v553 = vld [vmem:[#allocation2] sm:$0x3]
        %v554 = vld [vmem:[%s341] sm:$0xf]
        %v555 = vld [vmem:[%s341 + $0x4] sm:$0xf]
        %v556 = vld [vmem:[%s341 + $0x8] sm:$0xf]
        %v557 = vld [vmem:[%s341 + $0xc] sm:$0xf]
        %v558 = vld [vmem:[%s341 + $0x10] sm:$0xf]
        %v559 = vld [vmem:[%s341 + $0x14] sm:$0xf]
        %v560 = vld [vmem:[%s341 + $0x18] sm:$0xf]
        %v561 = vld [vmem:[%s341 + $0x1c] sm:$0xf]
        %v562 = vld [vmem:[%s341 + $0x20] sm:$0xf]
        %v563 = vld [vmem:[%s341 + $0x24] sm:$0xf]
        %v564 = vld [vmem:[%s341 + $0x28] sm:$0xf]
        %v565 = vld [vmem:[%s341 + $0x2c] sm:$0xf]
        %v566 = vld [vmem:[%s341 + $0x30] sm:$0xf]
        %v567 = vld [vmem:[%s341 + $0x34] sm:$0xf]
        %v568 = vld [vmem:[%s341 + $0x38] sm:$0xf]
        %v569 = vld [vmem:[%s341 + $0x3c] sm:$0xf]
        %v570 = vld [vmem:[%s341 + $0x40] sm:$0xf]
        %v571 = vld [vmem:[%s341 + $0x44] sm:$0xf]
        %v572 = vld [vmem:[%s341 + $0x48] sm:$0xf]
        %v573 = vld [vmem:[%s341 + $0x4c] sm:$0xf]
        %v574 = vld [vmem:[%s341 + $0x50] sm:$0xf]
        %v575 = vld [vmem:[%s341 + $0x54] sm:$0xf]
        %v576 = vld [vmem:[%s341 + $0x58] sm:$0xf]
        %v577 = vld [vmem:[%s341 + $0x5c] sm:$0xf]
        %v578 = vld [vmem:[%s341 + $0x60] sm:$0xf]
        %v579 = vld [vmem:[%s341 + $0x64] sm:$0xf]
        %v580 = vld [vmem:[%s341 + $0x68] sm:$0xf]
        %v581 = vld [vmem:[%s341 + $0x6c] sm:$0xf]
        %v582 = vld [vmem:[%s341 + $0x70] sm:$0xf]
        %v583 = vld [vmem:[%s341 + $0x74] sm:$0xf]
        %v584 = vld [vmem:[%s341 + $0x78] sm:$0xf]
        %v585 = vld [vmem:[%s341 + $0x7c] sm:$0xf]
        %v586 = vld [vmem:[%s341 + $0x80] sm:$0xf]
        %v587 = vld [vmem:[%s341 + $0x84] sm:$0xf]
        %v588 = vld [vmem:[%s341 + $0x88] sm:$0xf]
        %v589 = vld [vmem:[%s341 + $0x8c] sm:$0xf]
        %v590 = vld [vmem:[%s341 + $0x90] sm:$0xf]
        %v591 = vld [vmem:[%s341 + $0x94] sm:$0xf]
        %v592 = vld [vmem:[%s341 + $0x98] sm:$0xf]
        %v593 = vld [vmem:[%s341 + $0x9c] sm:$0xf]
        %v594 = vld [vmem:[%s341 + $0xa0] sm:$0xf]
        %v595 = vld [vmem:[%s341 + $0xa4] sm:$0xf]
        %v596 = vld [vmem:[%s341 + $0xa8] sm:$0xf]
        %v597 = vld [vmem:[%s341 + $0xac] sm:$0xf]
        %v598 = vld [vmem:[%s341 + $0xb0] sm:$0xf]
        %v599 = vld [vmem:[%s341 + $0xb4] sm:$0xf]
        %v600 = vld [vmem:[%s341 + $0xb8] sm:$0xf]
        %v601 = vld [vmem:[%s341 + $0xbc] sm:$0xf]
        %v602 = vld [vmem:[%s341 + $0xc0] sm:$0xf]
        %v603 = vld [vmem:[%s341 + $0xc4] sm:$0xf]
        %v604 = vld [vmem:[%s341 + $0xc8] sm:$0xf]
        %v605 = vld [vmem:[%s341 + $0xcc] sm:$0xf]
        %v606 = vld [vmem:[%s341 + $0xd0] sm:$0xf]
        %v607 = vld [vmem:[%s341 + $0xd4] sm:$0xf]
        %v608 = vld [vmem:[%s341 + $0xd8] sm:$0xf]
        %v609 = vld [vmem:[%s341 + $0xdc] sm:$0xf]
        %v610 = vld [vmem:[%s341 + $0xe0] sm:$0xf]
        %v611 = vld [vmem:[%s341 + $0xe4] sm:$0xf]
        %v612 = vld [vmem:[%s341 + $0xe8] sm:$0xf]
        %v613 = vld [vmem:[%s341 + $0xec] sm:$0xf]
        %v614 = vld [vmem:[%s341 + $0xf0] sm:$0xf]
        %v615 = vld [vmem:[%s341 + $0xf4] sm:$0xf]
        %v616 = vld [vmem:[%s341 + $0xf8] sm:$0xf]
        %v617 = vld [vmem:[%s341 + $0xfc] sm:$0xf]
        %v618 = vld [vmem:[%s341 + $0x100] sm:$0xf]
        %v619 = vld [vmem:[%s341 + $0x104] sm:$0xf]
        %v620 = vld [vmem:[%s341 + $0x108] sm:$0xf]
        %v621 = vld [vmem:[%s341 + $0x10c] sm:$0xf]
        %v622 = vld [vmem:[%s341 + $0x110] sm:$0xf]
        %v623 = vld [vmem:[%s341 + $0x114] sm:$0xf]
        %v624 = vld [vmem:[%s341 + $0x118] sm:$0xf]
        %v625 = vld [vmem:[%s341 + $0x11c] sm:$0xf]
        %v626 = vld [vmem:[%s341 + $0x120] sm:$0xf]
        %v627 = vld [vmem:[%s341 + $0x124] sm:$0xf]
        %v628 = vld [vmem:[%s341 + $0x128] sm:$0xf]
        %v629 = vld [vmem:[%s341 + $0x12c] sm:$0xf]
        %v630 = vld [vmem:[%s341 + $0x130] sm:$0xf]
        %v631 = vld [vmem:[%s341 + $0x134] sm:$0xf]
        %v632 = vld [vmem:[%s341 + $0x138] sm:$0xf]
        %v633 = vld [vmem:[%s341 + $0x13c] sm:$0xf]
        %v634 = vld [vmem:[%s341 + $0x140] sm:$0xf]
        %v635 = vld [vmem:[%s341 + $0x144] sm:$0xf]
        %v636 = vld [vmem:[%s341 + $0x148] sm:$0xf]
        %v637 = vld [vmem:[%s341 + $0x14c] sm:$0xf]
        %v638 = vld [vmem:[%s341 + $0x150] sm:$0xf]
        %v639 = vld [vmem:[%s341 + $0x154] sm:$0xf]
        %v640 = vld [vmem:[%s341 + $0x158] sm:$0xf]
        %v641 = vld [vmem:[%s341 + $0x15c] sm:$0xf]
        %v642 = vld [vmem:[%s341 + $0x160] sm:$0xf]
        %v643 = vld [vmem:[%s341 + $0x164] sm:$0xf]
        %v644 = vld [vmem:[%s341 + $0x168] sm:$0xf]
        %v645 = vld [vmem:[%s341 + $0x16c] sm:$0xf]
        %v646 = vld [vmem:[%s341 + $0x170] sm:$0xf]
        %v647 = vld [vmem:[%s341 + $0x174] sm:$0xf]
        %v648 = vld [vmem:[%s341 + $0x178] sm:$0xf]
        %v649 = vld [vmem:[%s341 + $0x17c] sm:$0xf]
        %v650 = vld [vmem:[%s341 + $0x180] sm:$0xf]
        %v651 = vld [vmem:[%s341 + $0x184] sm:$0xf]
        %v652 = vld [vmem:[%s341 + $0x188] sm:$0xf]
        %v653 = vld [vmem:[%s341 + $0x18c] sm:$0xf]
        %v654 = vld [vmem:[%s341 + $0x190] sm:$0xf]
        %v655 = vld [vmem:[%s341 + $0x194] sm:$0xf]
        %v656 = vld [vmem:[%s341 + $0x198] sm:$0xf]
        %v657 = vld [vmem:[%s341 + $0x19c] sm:$0xf]
        %v658 = vld [vmem:[%s341 + $0x1a0] sm:$0xf]
        %v659 = vld [vmem:[%s341 + $0x1a4] sm:$0xf]
        %v660 = vld [vmem:[%s341 + $0x1a8] sm:$0xf]
        %v661 = vld [vmem:[%s341 + $0x1ac] sm:$0xf]
        %v662 = vld [vmem:[%s341 + $0x1b0] sm:$0xf]
        %v663 = vld [vmem:[%s341 + $0x1b4] sm:$0xf]
        %v664 = vld [vmem:[%s341 + $0x1b8] sm:$0xf]
        %v665 = vld [vmem:[%s341 + $0x1bc] sm:$0xf]
        %v666 = vld [vmem:[%s341 + $0x1c0] sm:$0xf]
        %v667 = vld [vmem:[%s341 + $0x1c4] sm:$0xf]
        %v668 = vld [vmem:[%s341 + $0x1c8] sm:$0xf]
        %v669 = vld [vmem:[%s341 + $0x1cc] sm:$0xf]
        %v670 = vld [vmem:[%s341 + $0x1d0] sm:$0xf]
        %v671 = vld [vmem:[%s341 + $0x1d4] sm:$0xf]
        %v672 = vld [vmem:[%s341 + $0x1d8] sm:$0xf]
        %v673 = vld [vmem:[%s341 + $0x1dc] sm:$0xf]
        %v674 = vld [vmem:[%s341 + $0x1e0] sm:$0xf]
        %v675 = vld [vmem:[%s341 + $0x1e4] sm:$0xf]
        %v676 = vld [vmem:[%s341 + $0x1e8] sm:$0xf]
        %v677 = vld [vmem:[%s341 + $0x1ec] sm:$0xf]
        %v678 = vld [vmem:[%s341 + $0x1f0] sm:$0xf]
        %v679 = vld [vmem:[%s341 + $0x1f4] sm:$0xf]
        %v680 = vld [vmem:[%s341 + $0x1f8] sm:$0xf]
        %v681 = vld [vmem:[%s341 + $0x1fc] sm:$0xf]
        %v682 = vld [vmem:[%s341 + $0x200] sm:$0xf]
        %v683 = vld [vmem:[%s341 + $0x204] sm:$0xf]
        %v684 = vld [vmem:[%s341 + $0x208] sm:$0xf]
        %v685 = vld [vmem:[%s341 + $0x20c] sm:$0xf]
        %v686 = vld [vmem:[%s341 + $0x210] sm:$0xf]
        %v687 = vld [vmem:[%s341 + $0x214] sm:$0xf]
        %v688 = vld [vmem:[%s341 + $0x218] sm:$0xf]
        %v689 = vld [vmem:[%s341 + $0x21c] sm:$0xf]
        %v690 = vld [vmem:[%s341 + $0x220] sm:$0xf]
        %v691 = vld [vmem:[%s341 + $0x224] sm:$0xf]
        %v692 = vld [vmem:[%s341 + $0x228] sm:$0xf]
        %v693 = vld [vmem:[%s341 + $0x22c] sm:$0xf]
        %v694 = vld [vmem:[%s341 + $0x230] sm:$0xf]
        %v695 = vld [vmem:[%s341 + $0x234] sm:$0xf]
        %v696 = vld [vmem:[%s341 + $0x238] sm:$0xf]
        %v697 = vld [vmem:[%s341 + $0x23c] sm:$0xf]
        %v698 = vld [vmem:[%s341 + $0x240] sm:$0xf]
        %v699 = vld [vmem:[%s341 + $0x244] sm:$0xf]
        %v700 = vld [vmem:[%s341 + $0x248] sm:$0xf]
        %v701 = vld [vmem:[%s341 + $0x24c] sm:$0xf]
        %v702 = vld [vmem:[%s341 + $0x250] sm:$0xf]
        %v703 = vld [vmem:[%s341 + $0x254] sm:$0xf]
        %v704 = vld [vmem:[%s341 + $0x258] sm:$0xf]
        %v705 = vld [vmem:[%s341 + $0x25c] sm:$0xf]
        %v706 = vld [vmem:[%s341 + $0x260] sm:$0xf]
        %v707 = vld [vmem:[%s341 + $0x264] sm:$0xf]
        %v708 = vld [vmem:[%s341 + $0x268] sm:$0xf]
        %v709 = vld [vmem:[%s341 + $0x26c] sm:$0xf]
        %v710 = vld [vmem:[%s341 + $0x270] sm:$0xf]
        %v711 = vld [vmem:[%s341 + $0x274] sm:$0xf]
        %v712 = vld [vmem:[%s341 + $0x278] sm:$0xf]
        %v713 = vld [vmem:[%s341 + $0x27c] sm:$0xf]
        %v714 = vld [vmem:[%s341 + $0x280] sm:$0xf]
        %v715 = vld [vmem:[%s341 + $0x284] sm:$0xf]
        %v716 = vld [vmem:[%s341 + $0x288] sm:$0xf]
        %v717 = vld [vmem:[%s341 + $0x28c] sm:$0xf]
        %v718 = vld [vmem:[%s341 + $0x290] sm:$0xf]
        %v719 = vld [vmem:[%s341 + $0x294] sm:$0xf]
        %v720 = vld [vmem:[%s341 + $0x298] sm:$0xf]
        %v721 = vld [vmem:[%s341 + $0x29c] sm:$0xf]
        %v722 = vld [vmem:[%s341 + $0x2a0] sm:$0xf]
        %v723 = vld [vmem:[%s341 + $0x2a4] sm:$0xf]
        %v724 = vld [vmem:[%s341 + $0x2a8] sm:$0xf]
        %v725 = vld [vmem:[%s341 + $0x2ac] sm:$0xf]
        %v726 = vld [vmem:[%s341 + $0x2b0] sm:$0xf]
        %v727 = vld [vmem:[%s341 + $0x2b4] sm:$0xf]
        %v728 = vld [vmem:[%s341 + $0x2b8] sm:$0xf]
        %v729 = vld [vmem:[%s341 + $0x2bc] sm:$0xf]
        %v730 = vld [vmem:[%s341 + $0x2c0] sm:$0xf]
        %v731 = vld [vmem:[%s341 + $0x2c4] sm:$0xf]
        %v732 = vld [vmem:[%s341 + $0x2c8] sm:$0xf]
        %v733 = vld [vmem:[%s341 + $0x2cc] sm:$0xf]
        %v734 = vld [vmem:[%s341 + $0x2d0] sm:$0xf]
        %v735 = vld [vmem:[%s341 + $0x2d4] sm:$0xf]
        %v736 = vld [vmem:[%s341 + $0x2d8] sm:$0xf]
        %v737 = vld [vmem:[%s341 + $0x2dc] sm:$0xf]
        %v738 = vld [vmem:[%s341 + $0x2e0] sm:$0xf]
        %v739 = vld [vmem:[%s341 + $0x2e4] sm:$0xf]
        %v740 = vld [vmem:[%s341 + $0x2e8] sm:$0xf]
        %v741 = vld [vmem:[%s341 + $0x2ec] sm:$0xf]
        %v742 = vld [vmem:[%s341 + $0x2f0] sm:$0xf]
        %v743 = vld [vmem:[%s341 + $0x2f4] sm:$0xf]
        %v744 = vld [vmem:[%s341 + $0x2f8] sm:$0xf]
        %v745 = vld [vmem:[%s341 + $0x2fc] sm:$0xf]
        %v746 = vld [vmem:[%s341 + $0x300] sm:$0xf]
        %v747 = vld [vmem:[%s341 + $0x304] sm:$0xf]
        %v748 = vld [vmem:[%s341 + $0x308] sm:$0xf]
        %v749 = vld [vmem:[%s341 + $0x30c] sm:$0xf]
        %v750 = vld [vmem:[%s341 + $0x310] sm:$0xf]
        %v751 = vld [vmem:[%s341 + $0x314] sm:$0xf]
        %v752 = vld [vmem:[%s341 + $0x318] sm:$0xf]
        %v753 = vld [vmem:[%s341 + $0x31c] sm:$0xf]
        %v754 = vld [vmem:[%s341 + $0x320] sm:$0xf]
        %v755 = vld [vmem:[%s341 + $0x324] sm:$0xf]
        %v756 = vld [vmem:[%s341 + $0x328] sm:$0xf]
        %v757 = vld [vmem:[%s341 + $0x32c] sm:$0xf]
        %v758 = vld [vmem:[%s341 + $0x330] sm:$0xf]
        %v759 = vld [vmem:[%s341 + $0x334] sm:$0xf]
        %v760 = vld [vmem:[%s341 + $0x338] sm:$0xf]
        %v761 = vld [vmem:[%s341 + $0x33c] sm:$0xf]
        %v762 = vld [vmem:[%s341 + $0x340] sm:$0xf]
        %v763 = vld [vmem:[%s341 + $0x344] sm:$0xf]
        %v764 = vld [vmem:[%s341 + $0x348] sm:$0xf]
        %v765 = vld [vmem:[%s341 + $0x34c] sm:$0xf]
        %v766 = vld [vmem:[%s341 + $0x350] sm:$0xf]
        %v767 = vld [vmem:[%s341 + $0x354] sm:$0xf]
        %v768 = vld [vmem:[%s341 + $0x358] sm:$0xf]
        %v769 = vld [vmem:[%s341 + $0x35c] sm:$0xf]
        %v770 = vld [vmem:[%s341 + $0x360] sm:$0xf]
        %v771 = vld [vmem:[%s341 + $0x364] sm:$0xf]
        %v772 = vld [vmem:[%s341 + $0x368] sm:$0xf]
        %v773 = vld [vmem:[%s341 + $0x36c] sm:$0xf]
        %v774 = vld [vmem:[%s341 + $0x370] sm:$0xf]
        %v775 = vld [vmem:[%s341 + $0x374] sm:$0xf]
        %v776 = vld [vmem:[%s341 + $0x378] sm:$0xf]
        %v777 = vld [vmem:[%s341 + $0x37c] sm:$0xf]
        %v1002 = vunpack.c.l.b16 %v554
        %v1003 = vunpack.c.l.b16 %v555
        %v1004 = vunpack.c.l.b16 %v556
        %v1005 = vunpack.c.l.b16 %v557
        %v1006 = vunpack.c.l.b16 %v558
        %v1007 = vunpack.c.l.b16 %v559
        %v1008 = vunpack.c.l.b16 %v560
        %v1009 = vunpack.c.l.b16 %v561
        %v1010 = vunpack.c.l.b16 %v562
        %v1011 = vunpack.c.l.b16 %v563
        %v1012 = vunpack.c.l.b16 %v564
        %v1013 = vunpack.c.l.b16 %v565
        %v1014 = vunpack.c.l.b16 %v566
        %v1015 = vunpack.c.l.b16 %v567
        %v1016 = vunpack.c.l.b16 %v568
        %v1017 = vunpack.c.l.b16 %v569
        %v1018 = vunpack.c.l.b16 %v570
        %v1019 = vunpack.c.l.b16 %v571
        %v1020 = vunpack.c.l.b16 %v572
        %v1021 = vunpack.c.l.b16 %v573
        %v1022 = vunpack.c.l.b16 %v574
        %v1023 = vunpack.c.l.b16 %v575
        %v1024 = vunpack.c.l.b16 %v576
        %v1025 = vunpack.c.l.b16 %v577
        %v1026 = vunpack.c.l.b16 %v578
        %v1027 = vunpack.c.l.b16 %v579
        %v1028 = vunpack.c.l.b16 %v580
        %v1029 = vunpack.c.l.b16 %v581
        %v1030 = vunpack.c.l.b16 %v582
        %v1031 = vunpack.c.l.b16 %v583
        %v1032 = vunpack.c.l.b16 %v584
        %v1033 = vunpack.c.l.b16 %v585
        %v1034 = vunpack.c.l.b16 %v586
        %v1035 = vunpack.c.l.b16 %v587
        %v1036 = vunpack.c.l.b16 %v588
        %v1037 = vunpack.c.l.b16 %v589
        %v1038 = vunpack.c.l.b16 %v590
        %v1039 = vunpack.c.l.b16 %v591
        %v1040 = vunpack.c.l.b16 %v592
        %v1041 = vunpack.c.l.b16 %v593
        %v1042 = vunpack.c.l.b16 %v594
        %v1043 = vunpack.c.l.b16 %v595
        %v1044 = vunpack.c.l.b16 %v596
        %v1045 = vunpack.c.l.b16 %v597
        %v1046 = vunpack.c.l.b16 %v598
        %v1047 = vunpack.c.l.b16 %v599
        %v1048 = vunpack.c.l.b16 %v600
        %v1049 = vunpack.c.l.b16 %v601
        %v1050 = vunpack.c.l.b16 %v602
        %v1051 = vunpack.c.l.b16 %v603
        %v1052 = vunpack.c.l.b16 %v604
        %v1053 = vunpack.c.l.b16 %v605
        %v1054 = vunpack.c.l.b16 %v606
        %v1055 = vunpack.c.l.b16 %v607
        %v1056 = vunpack.c.l.b16 %v608
        %v1057 = vunpack.c.l.b16 %v609
        %v1058 = vunpack.c.l.b16 %v610
        %v1059 = vunpack.c.l.b16 %v611
        %v1060 = vunpack.c.l.b16 %v612
        %v1061 = vunpack.c.l.b16 %v613
        %v1062 = vunpack.c.l.b16 %v614
        %v1063 = vunpack.c.l.b16 %v615
        %v1064 = vunpack.c.l.b16 %v616
        %v1065 = vunpack.c.l.b16 %v617
        %v1066 = vunpack.c.l.b16 %v618
        %v1067 = vunpack.c.l.b16 %v619
        %v1068 = vunpack.c.l.b16 %v620
        %v1069 = vunpack.c.l.b16 %v621
        %v1070 = vunpack.c.l.b16 %v622
        %v1071 = vunpack.c.l.b16 %v623
        %v1072 = vunpack.c.l.b16 %v624
        %v1073 = vunpack.c.l.b16 %v625
        %v1074 = vunpack.c.l.b16 %v626
        %v1075 = vunpack.c.l.b16 %v627
        %v1076 = vunpack.c.l.b16 %v628
        %v1077 = vunpack.c.l.b16 %v629
        %v1078 = vunpack.c.l.b16 %v630
        %v1079 = vunpack.c.l.b16 %v631
        %v1080 = vunpack.c.l.b16 %v632
        %v1081 = vunpack.c.l.b16 %v633
        %v1082 = vunpack.c.l.b16 %v634
        %v1083 = vunpack.c.l.b16 %v635
        %v1084 = vunpack.c.l.b16 %v636
        %v1085 = vunpack.c.l.b16 %v637
        %v1086 = vunpack.c.l.b16 %v638
        %v1087 = vunpack.c.l.b16 %v639
        %v1088 = vunpack.c.l.b16 %v640
        %v1089 = vunpack.c.l.b16 %v641
        %v1090 = vunpack.c.l.b16 %v642
        %v1091 = vunpack.c.l.b16 %v643
        %v1092 = vunpack.c.l.b16 %v644
        %v1093 = vunpack.c.l.b16 %v645
        %v1094 = vunpack.c.l.b16 %v646
        %v1095 = vunpack.c.l.b16 %v647
        %v1096 = vunpack.c.l.b16 %v648
        %v1097 = vunpack.c.l.b16 %v649
        %v1098 = vunpack.c.l.b16 %v650
        %v1099 = vunpack.c.l.b16 %v651
        %v1100 = vunpack.c.l.b16 %v652
        %v1101 = vunpack.c.l.b16 %v653
        %v1102 = vunpack.c.l.b16 %v654
        %v1103 = vunpack.c.l.b16 %v655
        %v1104 = vunpack.c.l.b16 %v656
        %v1105 = vunpack.c.l.b16 %v657
        %v1106 = vunpack.c.l.b16 %v658
        %v1107 = vunpack.c.l.b16 %v659
        %v1108 = vunpack.c.l.b16 %v660
        %v1109 = vunpack.c.l.b16 %v661
        %v1110 = vunpack.c.l.b16 %v662
        %v1111 = vunpack.c.l.b16 %v663
        %v1112 = vunpack.c.l.b16 %v664
        %v1113 = vunpack.c.l.b16 %v665
        %v1114 = vunpack.c.l.b16 %v666
        %v1115 = vunpack.c.l.b16 %v667
        %v1116 = vunpack.c.l.b16 %v668
        %v1117 = vunpack.c.l.b16 %v669
        %v1118 = vunpack.c.l.b16 %v670
        %v1119 = vunpack.c.l.b16 %v671
        %v1120 = vunpack.c.l.b16 %v672
        %v1121 = vunpack.c.l.b16 %v673
        %v1122 = vunpack.c.l.b16 %v674
        %v1123 = vunpack.c.l.b16 %v675
        %v1124 = vunpack.c.l.b16 %v676
        %v1125 = vunpack.c.l.b16 %v677
        %v1126 = vunpack.c.l.b16 %v678
        %v1127 = vunpack.c.l.b16 %v679
        %v1128 = vunpack.c.l.b16 %v680
        %v1129 = vunpack.c.l.b16 %v681
        %v1130 = vunpack.c.l.b16 %v682
        %v1131 = vunpack.c.l.b16 %v683
        %v1132 = vunpack.c.l.b16 %v684
        %v1133 = vunpack.c.l.b16 %v685
        %v1134 = vunpack.c.l.b16 %v686
        %v1135 = vunpack.c.l.b16 %v687
        %v1136 = vunpack.c.l.b16 %v688
        %v1137 = vunpack.c.l.b16 %v689
        %v1138 = vunpack.c.l.b16 %v690
        %v1139 = vunpack.c.l.b16 %v691
        %v1140 = vunpack.c.l.b16 %v692
        %v1141 = vunpack.c.l.b16 %v693
        %v1142 = vunpack.c.l.b16 %v694
        %v1143 = vunpack.c.l.b16 %v695
        %v1144 = vunpack.c.l.b16 %v696
        %v1145 = vunpack.c.l.b16 %v697
        %v1146 = vunpack.c.l.b16 %v698
        %v1147 = vunpack.c.l.b16 %v699
        %v1148 = vunpack.c.l.b16 %v700
        %v1149 = vunpack.c.l.b16 %v701
        %v1150 = vunpack.c.l.b16 %v702
        %v1151 = vunpack.c.l.b16 %v703
        %v1152 = vunpack.c.l.b16 %v704
        %v1153 = vunpack.c.l.b16 %v705
        %v1154 = vunpack.c.l.b16 %v706
        %v1155 = vunpack.c.l.b16 %v707
        %v1156 = vunpack.c.l.b16 %v708
        %v1157 = vunpack.c.l.b16 %v709
        %v1158 = vunpack.c.l.b16 %v710
        %v1159 = vunpack.c.l.b16 %v711
        %v1160 = vunpack.c.l.b16 %v712
        %v1161 = vunpack.c.l.b16 %v713
        %v1162 = vunpack.c.l.b16 %v714
        %v1163 = vunpack.c.l.b16 %v715
        %v1164 = vunpack.c.l.b16 %v716
        %v1165 = vunpack.c.l.b16 %v717
        %v1166 = vunpack.c.l.b16 %v718
        %v1167 = vunpack.c.l.b16 %v719
        %v1168 = vunpack.c.l.b16 %v720
        %v1169 = vunpack.c.l.b16 %v721
        %v1170 = vunpack.c.l.b16 %v722
        %v1171 = vunpack.c.l.b16 %v723
        %v1172 = vunpack.c.l.b16 %v724
        %v1173 = vunpack.c.l.b16 %v725
        %v1174 = vunpack.c.l.b16 %v726
        %v1175 = vunpack.c.l.b16 %v727
        %v1176 = vunpack.c.l.b16 %v728
        %v1177 = vunpack.c.l.b16 %v729
        %v1178 = vunpack.c.l.b16 %v730
        %v1179 = vunpack.c.l.b16 %v731
        %v1180 = vunpack.c.l.b16 %v732
        %v1181 = vunpack.c.l.b16 %v733
        %v1182 = vunpack.c.l.b16 %v734
        %v1183 = vunpack.c.l.b16 %v735
        %v1184 = vunpack.c.l.b16 %v736
        %v1185 = vunpack.c.l.b16 %v737
        %v1186 = vunpack.c.l.b16 %v738
        %v1187 = vunpack.c.l.b16 %v739
        %v1188 = vunpack.c.l.b16 %v740
        %v1189 = vunpack.c.l.b16 %v741
        %v1190 = vunpack.c.l.b16 %v742
        %v1191 = vunpack.c.l.b16 %v743
        %v1192 = vunpack.c.l.b16 %v744
        %v1193 = vunpack.c.l.b16 %v745
        %v1194 = vunpack.c.l.b16 %v746
        %v1195 = vunpack.c.l.b16 %v747
        %v1196 = vunpack.c.l.b16 %v748
        %v1197 = vunpack.c.l.b16 %v749
        %v1198 = vunpack.c.l.b16 %v750
        %v1199 = vunpack.c.l.b16 %v751
        %v1200 = vunpack.c.l.b16 %v752
        %v1201 = vunpack.c.l.b16 %v753
        %v1202 = vunpack.c.l.b16 %v754
        %v1203 = vunpack.c.l.b16 %v755
        %v1204 = vunpack.c.l.b16 %v756
        %v1205 = vunpack.c.l.b16 %v757
        %v1206 = vunpack.c.l.b16 %v758
        %v1207 = vunpack.c.l.b16 %v759
        %v1208 = vunpack.c.l.b16 %v760
        %v1209 = vunpack.c.l.b16 %v761
        %v1210 = vunpack.c.l.b16 %v762
        %v1211 = vunpack.c.l.b16 %v763
        %v1212 = vunpack.c.l.b16 %v764
        %v1213 = vunpack.c.l.b16 %v765
        %v1214 = vunpack.c.l.b16 %v766
        %v1215 = vunpack.c.l.b16 %v767
        %v1216 = vunpack.c.l.b16 %v768
        %v1217 = vunpack.c.l.b16 %v769
        %v1218 = vunpack.c.l.b16 %v770
        %v1219 = vunpack.c.l.b16 %v771
        %v1220 = vunpack.c.l.b16 %v772
        %v1221 = vunpack.c.l.b16 %v773
        %v1222 = vunpack.c.l.b16 %v774
        %v1223 = vunpack.c.l.b16 %v775
        %v1224 = vunpack.c.l.b16 %v776
        %v1225 = vunpack.c.l.b16 %v777
        %v1226 = vpack.c.b16 %v1003, %v1002
        %v1227 = vpack.c.b16 %v1005, %v1004
        %v1228 = vpack.c.b16 %v1007, %v1006
        %v1229 = vpack.c.b16 %v1009, %v1008
        %v1230 = vpack.c.b16 %v1011, %v1010
        %v1231 = vpack.c.b16 %v1013, %v1012
        %v1232 = vpack.c.b16 %v1015, %v1014
        %v1233 = vpack.c.b16 %v1017, %v1016
        %v1234 = vpack.c.b16 %v1019, %v1018
        %v1235 = vpack.c.b16 %v1021, %v1020
        %v1236 = vpack.c.b16 %v1023, %v1022
        %v1237 = vpack.c.b16 %v1025, %v1024
        %v1238 = vpack.c.b16 %v1027, %v1026
        %v1239 = vpack.c.b16 %v1029, %v1028
        %v1240 = vpack.c.b16 %v1031, %v1030
        %v1241 = vpack.c.b16 %v1033, %v1032
        %v1242 = vpack.c.b16 %v1035, %v1034
        %v1243 = vpack.c.b16 %v1037, %v1036
        %v1244 = vpack.c.b16 %v1039, %v1038
        %v1245 = vpack.c.b16 %v1041, %v1040
        %v1246 = vpack.c.b16 %v1043, %v1042
        %v1247 = vpack.c.b16 %v1045, %v1044
        %v1248 = vpack.c.b16 %v1047, %v1046
        %v1249 = vpack.c.b16 %v1049, %v1048
        %v1250 = vpack.c.b16 %v1051, %v1050
        %v1251 = vpack.c.b16 %v1053, %v1052
        %v1252 = vpack.c.b16 %v1055, %v1054
        %v1253 = vpack.c.b16 %v1057, %v1056
        %v1254 = vpack.c.b16 %v1059, %v1058
        %v1255 = vpack.c.b16 %v1061, %v1060
        %v1256 = vpack.c.b16 %v1063, %v1062
        %v1257 = vpack.c.b16 %v1065, %v1064
        %v1258 = vpack.c.b16 %v1067, %v1066
        %v1259 = vpack.c.b16 %v1069, %v1068
        %v1260 = vpack.c.b16 %v1071, %v1070
        %v1261 = vpack.c.b16 %v1073, %v1072
        %v1262 = vpack.c.b16 %v1075, %v1074
        %v1263 = vpack.c.b16 %v1077, %v1076
        %v1264 = vpack.c.b16 %v1079, %v1078
        %v1265 = vpack.c.b16 %v1081, %v1080
        %v1266 = vpack.c.b16 %v1083, %v1082
        %v1267 = vpack.c.b16 %v1085, %v1084
        %v1268 = vpack.c.b16 %v1087, %v1086
        %v1269 = vpack.c.b16 %v1089, %v1088
        %v1270 = vpack.c.b16 %v1091, %v1090
        %v1271 = vpack.c.b16 %v1093, %v1092
        %v1272 = vpack.c.b16 %v1095, %v1094
        %v1273 = vpack.c.b16 %v1097, %v1096
        %v1274 = vpack.c.b16 %v1099, %v1098
        %v1275 = vpack.c.b16 %v1101, %v1100
        %v1276 = vpack.c.b16 %v1103, %v1102
        %v1277 = vpack.c.b16 %v1105, %v1104
        %v1278 = vpack.c.b16 %v1107, %v1106
        %v1279 = vpack.c.b16 %v1109, %v1108
        %v1280 = vpack.c.b16 %v1111, %v1110
        %v1281 = vpack.c.b16 %v1113, %v1112
        %v1282 = vpack.c.b16 %v1115, %v1114
        %v1283 = vpack.c.b16 %v1117, %v1116
        %v1284 = vpack.c.b16 %v1119, %v1118
        %v1285 = vpack.c.b16 %v1121, %v1120
        %v1286 = vpack.c.b16 %v1123, %v1122
        %v1287 = vpack.c.b16 %v1125, %v1124
        %v1288 = vpack.c.b16 %v1127, %v1126
        %v1289 = vpack.c.b16 %v1129, %v1128
        %v1290 = vpack.c.b16 %v1131, %v1130
        %v1291 = vpack.c.b16 %v1133, %v1132
        %v1292 = vpack.c.b16 %v1135, %v1134
        %v1293 = vpack.c.b16 %v1137, %v1136
        %v1294 = vpack.c.b16 %v1139, %v1138
        %v1295 = vpack.c.b16 %v1141, %v1140
        %v1296 = vpack.c.b16 %v1143, %v1142
        %v1297 = vpack.c.b16 %v1145, %v1144
        %v1298 = vpack.c.b16 %v1147, %v1146
        %v1299 = vpack.c.b16 %v1149, %v1148
        %v1300 = vpack.c.b16 %v1151, %v1150
        %v1301 = vpack.c.b16 %v1153, %v1152
        %v1302 = vpack.c.b16 %v1155, %v1154
        %v1303 = vpack.c.b16 %v1157, %v1156
        %v1304 = vpack.c.b16 %v1159, %v1158
        %v1305 = vpack.c.b16 %v1161, %v1160
        %v1306 = vpack.c.b16 %v1163, %v1162
        %v1307 = vpack.c.b16 %v1165, %v1164
        %v1308 = vpack.c.b16 %v1167, %v1166
        %v1309 = vpack.c.b16 %v1169, %v1168
        %v1310 = vpack.c.b16 %v1171, %v1170
        %v1311 = vpack.c.b16 %v1173, %v1172
        %v1312 = vpack.c.b16 %v1175, %v1174
        %v1313 = vpack.c.b16 %v1177, %v1176
        %v1314 = vpack.c.b16 %v1179, %v1178
        %v1315 = vpack.c.b16 %v1181, %v1180
        %v1316 = vpack.c.b16 %v1183, %v1182
        %v1317 = vpack.c.b16 %v1185, %v1184
        %v1318 = vpack.c.b16 %v1187, %v1186
        %v1319 = vpack.c.b16 %v1189, %v1188
        %v1320 = vpack.c.b16 %v1191, %v1190
        %v1321 = vpack.c.b16 %v1193, %v1192
        %v1322 = vpack.c.b16 %v1195, %v1194
        %v1323 = vpack.c.b16 %v1197, %v1196
        %v1324 = vpack.c.b16 %v1199, %v1198
        %v1325 = vpack.c.b16 %v1201, %v1200
        %v1326 = vpack.c.b16 %v1203, %v1202
        %v1327 = vpack.c.b16 %v1205, %v1204
        %v1328 = vpack.c.b16 %v1207, %v1206
        %v1329 = vpack.c.b16 %v1209, %v1208
        %v1330 = vpack.c.b16 %v1211, %v1210
        %v1331 = vpack.c.b16 %v1213, %v1212
        %v1332 = vpack.c.b16 %v1215, %v1214
        %v1333 = vpack.c.b16 %v1217, %v1216
        %v1334 = vpack.c.b16 %v1219, %v1218
        %v1335 = vpack.c.b16 %v1221, %v1220
        %v1336 = vpack.c.b16 %v1223, %v1222
        %v1337 = vpack.c.b16 %v1225, %v1224
        %1450 = vmatprep.subr.bf16.mxu0 0
        %1451 = vmatpush1.bf16.msra.mxu0 %v1233
        %1452 = vmatprep.subr.bf16.mxu0 0
        %1453 = vmatpush1.bf16.msra.mxu0 %v1232
        %1454 = vmatprep.subr.bf16.mxu0 0
        %1455 = vmatpush1.bf16.msra.mxu0 %v1231
        %1456 = vmatprep.subr.bf16.mxu0 0
        %1457 = vmatpush1.bf16.msra.mxu0 %v1230
        %1458 = vmatprep.subr.bf16.mxu0 0
        %1459 = vmatpush1.bf16.msra.mxu0 %v1229
        %1460 = vmatprep.subr.bf16.mxu0 0
        %1461 = vmatpush1.bf16.msra.mxu0 %v1228
        %1462 = vmatprep.subr.bf16.mxu0 0
        %1463 = vmatpush1.bf16.msra.mxu0 %v1227
        %1464 = vmatprep.subr.bf16.mxu0 0
        %1465 = vmatpush1.bf16.msra.mxu0 %v1226
        %1466 = vmatprep.subr.bf16.mxu0 0
        %1467 = vmatpush2.bf16.msra.mxu0 %v1241
        %1468 = vmatprep.subr.bf16.mxu0 0
        %1469 = vmatpush2.bf16.msra.mxu0 %v1240
        %1470 = vmatprep.subr.bf16.mxu0 0
        %1471 = vmatpush2.bf16.msra.mxu0 %v1239
        %1472 = vmatprep.subr.bf16.mxu0 0
        %1473 = vmatpush2.bf16.msra.mxu0 %v1238
        %1474 = vmatprep.subr.bf16.mxu0 0
        %1475 = vmatpush2.bf16.msra.mxu0 %v1237
        %1476 = vmatprep.subr.bf16.mxu0 0
        %1477 = vmatpush2.bf16.msra.mxu0 %v1236
        %1478 = vmatprep.subr.bf16.mxu0 0
        %1479 = vmatpush2.bf16.msra.mxu0 %v1235
        %1480 = vmatprep.subr.bf16.mxu0 0
        %1481 = vmatpush2.bf16.msra.mxu0 %v1234
        %1482 = vmatprep.mubr.bf16.mxu0 %v540
        %1483 = vmatmul.mubr.bf16.gmra.mxu0 %v539
        %v1484 = vpop.f32.mrf.mxu0
        %v1485 = vadd.f32 0.0, %v1484
        %v1486 = vpop.f32.mrf.mxu0
        %v1487 = vpop.f32.mrf.mxu0
        %v1488 = vpop.f32.mrf.mxu0
        %1489 = vdwg.mxu0
        %1490 = vmatprep.subr.bf16.mxu0 0
        %1491 = vmatpush1.bf16.msra.mxu0 %v1249
        %1492 = vmatprep.subr.bf16.mxu0 0
        %1493 = vmatpush1.bf16.msra.mxu0 %v1248
        %1494 = vmatprep.subr.bf16.mxu0 0
        %1495 = vmatpush1.bf16.msra.mxu0 %v1247
        %1496 = vmatprep.subr.bf16.mxu0 0
        %1497 = vmatpush1.bf16.msra.mxu0 %v1246
        %1498 = vmatprep.subr.bf16.mxu0 0
        %1499 = vmatpush1.bf16.msra.mxu0 %v1245
        %1500 = vmatprep.subr.bf16.mxu0 0
        %1501 = vmatpush1.bf16.msra.mxu0 %v1244
        %1502 = vmatprep.subr.bf16.mxu0 0
        %1503 = vmatpush1.bf16.msra.mxu0 %v1243
        %1504 = vmatprep.subr.bf16.mxu0 0
        %1505 = vmatpush1.bf16.msra.mxu0 %v1242
        %1506 = vmatprep.subr.bf16.mxu0 0
        %1507 = vmatpush2.bf16.msra.mxu0 %v1257
        %1508 = vmatprep.subr.bf16.mxu0 0
        %1509 = vmatpush2.bf16.msra.mxu0 %v1256
        %1510 = vmatprep.subr.bf16.mxu0 0
        %1511 = vmatpush2.bf16.msra.mxu0 %v1255
        %1512 = vmatprep.subr.bf16.mxu0 0
        %1513 = vmatpush2.bf16.msra.mxu0 %v1254
        %1514 = vmatprep.subr.bf16.mxu0 0
        %1515 = vmatpush2.bf16.msra.mxu0 %v1253
        %1516 = vmatprep.subr.bf16.mxu0 0
        %1517 = vmatpush2.bf16.msra.mxu0 %v1252
        %1518 = vmatprep.subr.bf16.mxu0 0
        %1519 = vmatpush2.bf16.msra.mxu0 %v1251
        %1520 = vmatprep.subr.bf16.mxu0 0
        %1521 = vmatpush2.bf16.msra.mxu0 %v1250
        %1522 = vmatprep.mubr.bf16.mxu0 %v542
        %1523 = vmatmul.mubr.bf16.gmra.mxu0 %v541
        %v1524 = vpop.f32.mrf.mxu0
        %v1525 = vadd.f32 %v1485, %v1524
        %v1526 = vpop.f32.mrf.mxu0
        %v1527 = vpop.f32.mrf.mxu0
        %v1528 = vpop.f32.mrf.mxu0
        %1529 = vdwg.mxu0
        %1530 = vmatprep.subr.bf16.mxu0 0
        %1531 = vmatpush1.bf16.msra.mxu0 %v1265
        %1532 = vmatprep.subr.bf16.mxu0 0
        %1533 = vmatpush1.bf16.msra.mxu0 %v1264
        %1534 = vmatprep.subr.bf16.mxu0 0
        %1535 = vmatpush1.bf16.msra.mxu0 %v1263
        %1536 = vmatprep.subr.bf16.mxu0 0
        %1537 = vmatpush1.bf16.msra.mxu0 %v1262
        %1538 = vmatprep.subr.bf16.mxu0 0
        %1539 = vmatpush1.bf16.msra.mxu0 %v1261
        %1540 = vmatprep.subr.bf16.mxu0 0
        %1541 = vmatpush1.bf16.msra.mxu0 %v1260
        %1542 = vmatprep.subr.bf16.mxu0 0
        %1543 = vmatpush1.bf16.msra.mxu0 %v1259
        %1544 = vmatprep.subr.bf16.mxu0 0
        %1545 = vmatpush1.bf16.msra.mxu0 %v1258
        %1546 = vmatprep.subr.bf16.mxu0 0
        %1547 = vmatpush2.bf16.msra.mxu0 %v1273
        %1548 = vmatprep.subr.bf16.mxu0 0
        %1549 = vmatpush2.bf16.msra.mxu0 %v1272
        %1550 = vmatprep.subr.bf16.mxu0 0
        %1551 = vmatpush2.bf16.msra.mxu0 %v1271
        %1552 = vmatprep.subr.bf16.mxu0 0
        %1553 = vmatpush2.bf16.msra.mxu0 %v1270
        %1554 = vmatprep.subr.bf16.mxu0 0
        %1555 = vmatpush2.bf16.msra.mxu0 %v1269
        %1556 = vmatprep.subr.bf16.mxu0 0
        %1557 = vmatpush2.bf16.msra.mxu0 %v1268
        %1558 = vmatprep.subr.bf16.mxu0 0
        %1559 = vmatpush2.bf16.msra.mxu0 %v1267
        %1560 = vmatprep.subr.bf16.mxu0 0
        %1561 = vmatpush2.bf16.msra.mxu0 %v1266
        %1562 = vmatprep.mubr.bf16.mxu0 %v544
        %1563 = vmatmul.mubr.bf16.gmra.mxu0 %v543
        %v1564 = vpop.f32.mrf.mxu0
        %v1565 = vadd.f32 %v1525, %v1564
        %v1566 = vpop.f32.mrf.mxu0
        %v1567 = vpop.f32.mrf.mxu0
        %v1568 = vpop.f32.mrf.mxu0
        %1569 = vdwg.mxu0
        %1570 = vmatprep.subr.bf16.mxu0 0
        %1571 = vmatpush1.bf16.msra.mxu0 %v1281
        %1572 = vmatprep.subr.bf16.mxu0 0
        %1573 = vmatpush1.bf16.msra.mxu0 %v1280
        %1574 = vmatprep.subr.bf16.mxu0 0
        %1575 = vmatpush1.bf16.msra.mxu0 %v1279
        %1576 = vmatprep.subr.bf16.mxu0 0
        %1577 = vmatpush1.bf16.msra.mxu0 %v1278
        %1578 = vmatprep.subr.bf16.mxu0 0
        %1579 = vmatpush1.bf16.msra.mxu0 %v1277
        %1580 = vmatprep.subr.bf16.mxu0 0
        %1581 = vmatpush1.bf16.msra.mxu0 %v1276
        %1582 = vmatprep.subr.bf16.mxu0 0
        %1583 = vmatpush1.bf16.msra.mxu0 %v1275
        %1584 = vmatprep.subr.bf16.mxu0 0
        %1585 = vmatpush1.bf16.msra.mxu0 %v1274
        %1586 = vmatprep.subr.bf16.mxu0 0
        %1587 = vmatpush2.bf16.msra.mxu0 %v1289
        %1588 = vmatprep.subr.bf16.mxu0 0
        %1589 = vmatpush2.bf16.msra.mxu0 %v1288
        %1590 = vmatprep.subr.bf16.mxu0 0
        %1591 = vmatpush2.bf16.msra.mxu0 %v1287
        %1592 = vmatprep.subr.bf16.mxu0 0
        %1593 = vmatpush2.bf16.msra.mxu0 %v1286
        %1594 = vmatprep.subr.bf16.mxu0 0
        %1595 = vmatpush2.bf16.msra.mxu0 %v1285
        %1596 = vmatprep.subr.bf16.mxu0 0
        %1597 = vmatpush2.bf16.msra.mxu0 %v1284
        %1598 = vmatprep.subr.bf16.mxu0 0
        %1599 = vmatpush2.bf16.msra.mxu0 %v1283
        %1600 = vmatprep.subr.bf16.mxu0 0
        %1601 = vmatpush2.bf16.msra.mxu0 %v1282
        %1602 = vmatprep.mubr.bf16.mxu0 %v546
        %1603 = vmatmul.mubr.bf16.gmra.mxu0 %v545
        %v1604 = vpop.f32.mrf.mxu0
        %v1605 = vadd.f32 %v1565, %v1604
        %v1606 = vpop.f32.mrf.mxu0
        %v1607 = vpop.f32.mrf.mxu0
        %v1608 = vpop.f32.mrf.mxu0
        %1609 = vdwg.mxu0
        %1610 = vmatprep.subr.bf16.mxu0 0
        %1611 = vmatpush1.bf16.msra.mxu0 %v1297
        %1612 = vmatprep.subr.bf16.mxu0 0
        %1613 = vmatpush1.bf16.msra.mxu0 %v1296
        %1614 = vmatprep.subr.bf16.mxu0 0
        %1615 = vmatpush1.bf16.msra.mxu0 %v1295
        %1616 = vmatprep.subr.bf16.mxu0 0
        %1617 = vmatpush1.bf16.msra.mxu0 %v1294
        %1618 = vmatprep.subr.bf16.mxu0 0
        %1619 = vmatpush1.bf16.msra.mxu0 %v1293
        %1620 = vmatprep.subr.bf16.mxu0 0
        %1621 = vmatpush1.bf16.msra.mxu0 %v1292
        %1622 = vmatprep.subr.bf16.mxu0 0
        %1623 = vmatpush1.bf16.msra.mxu0 %v1291
        %1624 = vmatprep.subr.bf16.mxu0 0
        %1625 = vmatpush1.bf16.msra.mxu0 %v1290
        %1626 = vmatprep.subr.bf16.mxu0 0
        %1627 = vmatpush2.bf16.msra.mxu0 %v1305
        %1628 = vmatprep.subr.bf16.mxu0 0
        %1629 = vmatpush2.bf16.msra.mxu0 %v1304
        %1630 = vmatprep.subr.bf16.mxu0 0
        %1631 = vmatpush2.bf16.msra.mxu0 %v1303
        %1632 = vmatprep.subr.bf16.mxu0 0
        %1633 = vmatpush2.bf16.msra.mxu0 %v1302
        %1634 = vmatprep.subr.bf16.mxu0 0
        %1635 = vmatpush2.bf16.msra.mxu0 %v1301
        %1636 = vmatprep.subr.bf16.mxu0 0
        %1637 = vmatpush2.bf16.msra.mxu0 %v1300
        %1638 = vmatprep.subr.bf16.mxu0 0
        %1639 = vmatpush2.bf16.msra.mxu0 %v1299
        %1640 = vmatprep.subr.bf16.mxu0 0
        %1641 = vmatpush2.bf16.msra.mxu0 %v1298
        %1642 = vmatprep.mubr.bf16.mxu0 %v548
        %1643 = vmatmul.mubr.bf16.gmra.mxu0 %v547
        %v1644 = vpop.f32.mrf.mxu0
        %v1645 = vadd.f32 %v1605, %v1644
        %v1646 = vpop.f32.mrf.mxu0
        %v1647 = vpop.f32.mrf.mxu0
        %v1648 = vpop.f32.mrf.mxu0
        %1649 = vdwg.mxu0
        %1650 = vmatprep.subr.bf16.mxu0 0
        %1651 = vmatpush1.bf16.msra.mxu0 %v1313
        %1652 = vmatprep.subr.bf16.mxu0 0
        %1653 = vmatpush1.bf16.msra.mxu0 %v1312
        %1654 = vmatprep.subr.bf16.mxu0 0
        %1655 = vmatpush1.bf16.msra.mxu0 %v1311
        %1656 = vmatprep.subr.bf16.mxu0 0
        %1657 = vmatpush1.bf16.msra.mxu0 %v1310
        %1658 = vmatprep.subr.bf16.mxu0 0
        %1659 = vmatpush1.bf16.msra.mxu0 %v1309
        %1660 = vmatprep.subr.bf16.mxu0 0
        %1661 = vmatpush1.bf16.msra.mxu0 %v1308
        %1662 = vmatprep.subr.bf16.mxu0 0
        %1663 = vmatpush1.bf16.msra.mxu0 %v1307
        %1664 = vmatprep.subr.bf16.mxu0 0
        %1665 = vmatpush1.bf16.msra.mxu0 %v1306
        %1666 = vmatprep.subr.bf16.mxu0 0
        %1667 = vmatpush2.bf16.msra.mxu0 %v1321
        %1668 = vmatprep.subr.bf16.mxu0 0
        %1669 = vmatpush2.bf16.msra.mxu0 %v1320
        %1670 = vmatprep.subr.bf16.mxu0 0
        %1671 = vmatpush2.bf16.msra.mxu0 %v1319
        %1672 = vmatprep.subr.bf16.mxu0 0
        %1673 = vmatpush2.bf16.msra.mxu0 %v1318
        %1674 = vmatprep.subr.bf16.mxu0 0
        %1675 = vmatpush2.bf16.msra.mxu0 %v1317
        %1676 = vmatprep.subr.bf16.mxu0 0
        %1677 = vmatpush2.bf16.msra.mxu0 %v1316
        %1678 = vmatprep.subr.bf16.mxu0 0
        %1679 = vmatpush2.bf16.msra.mxu0 %v1315
        %1680 = vmatprep.subr.bf16.mxu0 0
        %1681 = vmatpush2.bf16.msra.mxu0 %v1314
        %1682 = vmatprep.mubr.bf16.mxu0 %v550
        %1683 = vmatmul.mubr.bf16.gmra.mxu0 %v549
        %v1684 = vpop.f32.mrf.mxu0
        %v1685 = vadd.f32 %v1645, %v1684
        %v1686 = vpop.f32.mrf.mxu0
        %v1687 = vpop.f32.mrf.mxu0
        %v1688 = vpop.f32.mrf.mxu0
        %1689 = vdwg.mxu0
        %1690 = vmatprep.subr.bf16.mxu0 0
        %1691 = vmatpush1.bf16.msra.mxu0 %v1329
        %1692 = vmatprep.subr.bf16.mxu0 0
        %1693 = vmatpush1.bf16.msra.mxu0 %v1328
        %1694 = vmatprep.subr.bf16.mxu0 0
        %1695 = vmatpush1.bf16.msra.mxu0 %v1327
        %1696 = vmatprep.subr.bf16.mxu0 0
        %1697 = vmatpush1.bf16.msra.mxu0 %v1326
        %1698 = vmatprep.subr.bf16.mxu0 0
        %1699 = vmatpush1.bf16.msra.mxu0 %v1325
        %1700 = vmatprep.subr.bf16.mxu0 0
        %1701 = vmatpush1.bf16.msra.mxu0 %v1324
        %1702 = vmatprep.subr.bf16.mxu0 0
        %1703 = vmatpush1.bf16.msra.mxu0 %v1323
        %1704 = vmatprep.subr.bf16.mxu0 0
        %1705 = vmatpush1.bf16.msra.mxu0 %v1322
        %1706 = vmatprep.subr.bf16.mxu0 0
        %1707 = vmatpush2.bf16.msra.mxu0 %v1337
        %1708 = vmatprep.subr.bf16.mxu0 0
        %1709 = vmatpush2.bf16.msra.mxu0 %v1336
        %1710 = vmatprep.subr.bf16.mxu0 0
        %1711 = vmatpush2.bf16.msra.mxu0 %v1335
        %1712 = vmatprep.subr.bf16.mxu0 0
        %1713 = vmatpush2.bf16.msra.mxu0 %v1334
        %1714 = vmatprep.subr.bf16.mxu0 0
        %1715 = vmatpush2.bf16.msra.mxu0 %v1333
        %1716 = vmatprep.subr.bf16.mxu0 0
        %1717 = vmatpush2.bf16.msra.mxu0 %v1332
        %1718 = vmatprep.subr.bf16.mxu0 0
        %1719 = vmatpush2.bf16.msra.mxu0 %v1331
        %1720 = vmatprep.subr.bf16.mxu0 0
        %1721 = vmatpush2.bf16.msra.mxu0 %v1330
        %1722 = vmatprep.mubr.bf16.mxu0 %v552
        %1723 = vmatmul.mubr.bf16.gmra.mxu0 %v551
        %v1724 = vpop.f32.mrf.mxu0
        %v1725 = vadd.f32 %v1685, %v1724
        %v1726 = vpop.f32.mrf.mxu0
        %v1727 = vpop.f32.mrf.mxu0
        %v1728 = vpop.f32.mrf.mxu0
        %1729 = vdwg.mxu0
        %v1730 = vadd.f32 %v553, %v1725
        %1731 = vst [vmem:[#allocation2] sm:$0x3] %v1730
        %p1732 = scmp.eq.s32.totalorder %s28, 3
        // Predicated region
        $region81: #{tpu_custom_call.1} parent=51 // pred_check
          %p1733 = pneg %p1732
        $region82: #{tpu_custom_call.1} parent=51 // pred_check_branch
          %1735 = sbr.rel (%p1733) target = $region84
        $region83: #{tpu_custom_call.1} parent=51 // pred_region
          %v1736 = vld [vmem:[#allocation2] sm:$0x3]
          %v1737 = vld [vmem:[#allocation13] sm:$0x1]
          %v1739 = vlaneseq
          %v1740 = vshrl.u32 %v1739, 7
          %v1741 = vsub.s32 0, %v1740
          %v1742 = vrot.slane %v1737, %v1741
          %v1744 = vadd.f32 %v1736, %v1742
          %vm1745 = vcmp.gt.f32.partialorder %v1744, 0.0
          %v1746 = vmul.f32 %v420, %v1744
          %v1747 = vsel %vm1745, %v1744, %v1746
          %v1748 = vld [vmem:[%s6] sm:$0xff]
          %v1749 = vld [vmem:[%s6 + $0x8] sm:$0xff]
          %v1750 = vld [vmem:[%s6 + $0x10] sm:$0xff]
          %v1751 = vld [vmem:[%s6 + $0x18] sm:$0xff]
          %v1752 = vld [vmem:[%s6 + $0x20] sm:$0xff]
          %v1753 = vld [vmem:[%s6 + $0x28] sm:$0xff]
          %v1754 = vld [vmem:[%s6 + $0x30] sm:$0xff]
          %v1755 = vld [vmem:[%s6 + $0x38] sm:$0xff]
          %v1756 = vld [vmem:[%s6 + $0x40] sm:$0xff]
          %v1757 = vld [vmem:[%s6 + $0x48] sm:$0xff]
          %v1758 = vld [vmem:[%s6 + $0x50] sm:$0xff]
          %v1759 = vld [vmem:[%s6 + $0x58] sm:$0xff]
          %v1760 = vld [vmem:[%s6 + $0x60] sm:$0xff]
          %v1761 = vld [vmem:[%s6 + $0x68] sm:$0xff]
          %v1762 = vld [vmem:[%s6 + $0x70] sm:$0xff]
          %v1763 = vld [vmem:[%s6 + $0x78] sm:$0xff]
          %v1764 = vld [vmem:[#allocation14] sm:$0x1]
          %v1766 = vlaneseq
          %v1767 = vshrl.u32 %v1766, 7
          %v1768 = vsub.s32 0, %v1767
          %v1769 = vrot.slane %v1764, %v1768
          %1771 = vmatprep.subr.mxu0 0.0
          %1772 = vmatpush1.msra.mxu0 %v1763
          %1773 = vmatprep.subr.mxu0 0.0
          %1774 = vmatpush1.msra.mxu0 %v1762
          %1775 = vmatprep.subr.mxu0 0.0
          %1776 = vmatpush1.msra.mxu0 %v1761
          %1777 = vmatprep.subr.mxu0 0.0
          %1778 = vmatpush1.msra.mxu0 %v1760
          %1779 = vmatprep.subr.mxu0 0.0
          %1780 = vmatpush1.msra.mxu0 %v1759
          %1781 = vmatprep.subr.mxu0 0.0
          %1782 = vmatpush1.msra.mxu0 %v1758
          %1783 = vmatprep.subr.mxu0 0.0
          %1784 = vmatpush1.msra.mxu0 %v1757
          %1785 = vmatprep.subr.mxu0 0.0
          %1786 = vmatpush1.msra.mxu0 %v1756
          %1787 = vmatprep.subr.mxu0 0.0
          %1788 = vmatpush1.msra.mxu0 %v1755
          %1789 = vmatprep.subr.mxu0 0.0
          %1790 = vmatpush1.msra.mxu0 %v1754
          %1791 = vmatprep.subr.mxu0 0.0
          %1792 = vmatpush1.msra.mxu0 %v1753
          %1793 = vmatprep.subr.mxu0 0.0
          %1794 = vmatpush1.msra.mxu0 %v1752
          %1795 = vmatprep.subr.mxu0 0.0
          %1796 = vmatpush1.msra.mxu0 %v1751
          %1797 = vmatprep.subr.mxu0 0.0
          %1798 = vmatpush1.msra.mxu0 %v1750
          %1799 = vmatprep.subr.mxu0 0.0
          %1800 = vmatpush1.msra.mxu0 %v1749
          %1801 = vmatprep.subr.mxu0 0.0
          %1802 = vmatpush1.msra.mxu0 %v1748
          %1803 = vmatprep.subr.mxu0 0.0
          %1804 = vmatpush2.msra.mxu0 0.0
          %1805 = vmatprep.subr.mxu0 0.0
          %1806 = vmatpush2.msra.mxu0 0.0
          %1807 = vmatprep.subr.mxu0 0.0
          %1808 = vmatpush2.msra.mxu0 0.0
          %1809 = vmatprep.subr.mxu0 0.0
          %1810 = vmatpush2.msra.mxu0 0.0
          %1811 = vmatprep.subr.mxu0 0.0
          %1812 = vmatpush2.msra.mxu0 0.0
          %1813 = vmatprep.subr.mxu0 0.0
          %1814 = vmatpush2.msra.mxu0 0.0
          %1815 = vmatprep.subr.mxu0 0.0
          %1816 = vmatpush2.msra.mxu0 0.0
          %1817 = vmatprep.subr.mxu0 0.0
          %1818 = vmatpush2.msra.mxu0 0.0
          %1819 = vmatprep.subr.mxu0 0.0
          %1820 = vmatpush2.msra.mxu0 0.0
          %1821 = vmatprep.subr.mxu0 0.0
          %1822 = vmatpush2.msra.mxu0 0.0
          %1823 = vmatprep.subr.mxu0 0.0
          %1824 = vmatpush2.msra.mxu0 0.0
          %1825 = vmatprep.subr.mxu0 0.0
          %1826 = vmatpush2.msra.mxu0 0.0
          %1827 = vmatprep.subr.mxu0 0.0
          %1828 = vmatpush2.msra.mxu0 0.0
          %1829 = vmatprep.subr.mxu0 0.0
          %1830 = vmatpush2.msra.mxu0 0.0
          %1831 = vmatprep.subr.mxu0 0.0
          %1832 = vmatpush2.msra.mxu0 0.0
          %1833 = vmatprep.subr.mxu0 0.0
          %1834 = vmatpush2.msra.mxu0 0.0
          %1835 = vmatprep.mubr.f32.mxu0 0.0
          %1836 = vmatmul.mubr.f32.gmra.mxu0 %v1747
          %v1837 = vpop.f32.mrf.mxu0
          %v1838 = vadd.f32 %v1769, %v1837
          %v1839 = vpop.f32.mrf.mxu0
          %1840 = vdwg.mxu0
          %vm1841 = vcmask 25600
          %v1842 = vsel %vm1841, %v1838, -inf
          %1843 = vmax.xlane.f32.xlu0 %v1842
          %v1844 = vpop.xlane.xlu0 %1843
          %v1845 = vsub.f32 %v1838, %v1844
          %v1846 = vmul.f32 %v1845, 1.442695
          %v1847 = vpow.pop %v1846
          %v1848 = vsel %vm1841, %v1847, 0.0
          %1849 = vadd.xlane.f32.xlu0 %v1848
          %v1850 = vpop.xlane.xlu0 %1849
          %v1851 = vrcp.pop %v1850
          %v1852 = vmul.f32 %v1847, %v1851
          %1853 = vst.msk [vmem:[#allocation16] sm:$0x3] %vm1841, %v1852
        $region84: #{tpu_custom_call.1} parent=51 // pred_fallthru
          _
        // Predicated region
        $region85: #{tpu_custom_call.1} parent=51 // pred_check
          %p1854 = pneg %p214
        $region86: #{tpu_custom_call.1} parent=51 // pred_check_branch
          %1856 = sbr.rel (%p1854) target = $region88
        $region87: #{tpu_custom_call.1} parent=51 // pred_region
          %s1858 = ssub.s32 32, 32
          %1859 = vsyncadd [#allocation6], %s1858
          %s1861 = sshll.u32 [#allocation16], 4
          %s1862 = int_to_ptr.vmem [resolvable:$true] %s1861
          %1864 = dma.vmem_to_hbm [thread:$0]  %s1862, 32, %s8, [#allocation6]
        $region88: #{tpu_custom_call.1} parent=51 // pred_fallthru
          _
        // Predicated region
        $region89: #{tpu_custom_call.1} parent=51 // pred_check
          %p1865 = pneg %p214
        $region90: #{tpu_custom_call.1} parent=51 // pred_check_branch
          %1867 = sbr.rel (%p1865) target = $region92
        $region91: #{tpu_custom_call.1} parent=51 // pred_region
          %1868 = dma.done [#allocation6], 32
        $region92: #{tpu_custom_call.1} parent=51 // pred_fallthru
          _
      $region52: #{tpu_custom_call.1} parent=5 // pred_fallthru
        _
      %p1869 = scmp.le.s32.totalorder 2, %s23
      // Predicated region
      $region93: #{tpu_custom_call.1} parent=5 // pred_check
        %p1870 = pneg %p1869
      $region94: #{tpu_custom_call.1} parent=5 // pred_check_branch
        %1872 = sbr.rel (%p1870) target = $region96
      $region95: #{tpu_custom_call.1} parent=5 // pred_region
        %s1873 = ssub.s32 %s23, 2
      $region96: #{tpu_custom_call.1} parent=5 // pred_fallthru
        _
    $region6: #{tpu_custom_call.1} parent=1 // loop_footer
      %s27 = sadd.s32 1, %s23
    $region7: #{tpu_custom_call.1} parent=1 // loop_footer_branch
      %22 = sbr.rel target = $region3
    $region8: #{tpu_custom_call.1} parent=1 // loop_exit
      _
    %1874 = vsyncpa [#allocation5], 1
    %s1875 = scalar_lea.sflag [#allocation5], 1
    %1876 = vsyncpa %s1875, 1
    %1877 = vsyncpa [#allocation12], 1
    %s1878 = scalar_lea.sflag [#allocation12], 1
    %1879 = vsyncpa %s1878, 1
    %1880 = vsyncpa [#allocation15], 1
    %1881 = vsyncpa [#allocation6], 1
    %s1882 = scalar_lea.sflag [#allocation6], 1
    %1883 = vsyncpa %s1882, 1
    %1884 = vsyncpa [#allocation7], 1
    %s1885 = scalar_lea.sflag [#allocation7], 1
    %1886 = vsyncpa %s1885, 1
    %1887 = vsyncpa [#allocation8], 1
    %s1888 = scalar_lea.sflag [#allocation8], 1
    %1889 = vsyncpa %s1888, 1

</llo_original>
